<compile_context>
chip_gen: v5e
topology: v5e:2x2
jax: 0.10.0
libtpu: 0.0.40
codegen_flags: <defaults>
</compile_context>

<pallas_src>
import functools

import jax
import jax.numpy as jnp
from jax.experimental import pallas as pl
from jax.experimental.pallas import tpu as pltpu

# ---------------------------------------------------------------------------
# Model configuration (mirrors the module __init__ defaults)
# ---------------------------------------------------------------------------
INPUT_SIZE = 128                      # malware feature vector size (small demo)
N_CLASSES = 2
DENSE_HIDDEN_UNITS = [200, 200]       # parse_args default
ALARM_DIMS = [sum(DENSE_HIDDEN_UNITS), 112, 100, 300, 200, 77, 1]

H_PAD = 256                           # padded hidden width (200 -> 256)
PROB_LANE = N_CLASSES                 # lane where x_prob lands in the output slab

_SELU_ALPHA = 1.6732632423543772848170429916717
_SELU_SCALE = 1.0507009873554804934193349852946


def _selu(x):
    return _SELU_SCALE * jnp.where(x > 0, x, _SELU_ALPHA * (jnp.exp(x) - 1.0))


def _rup(n, m=128):
    return ((n + m - 1) // m) * m


# ---------------------------------------------------------------------------
# Pallas kernel: one TB-row batch tile, all (padded, bf16) weights resident
# ---------------------------------------------------------------------------
def _dla_kernel(
    x_ref,
    w0_ref, b0_ref,                                   # detector layer 0
    w1f_ref, b1f_ref,                                 # fused [W1 | AW0a], [b1 | ab0]
    w2f_ref, b2f_ref,                                 # fused [W2 | AW0b], [b2 | 0]
    aw1_ref, ab1_ref, aw2_ref, ab2_ref,               # alarm L1, L2
    aw3_ref, ab3_ref, aw4_ref, ab4_ref,               # alarm L3, L4
    aw5_ref, ab5_ref,                                 # alarm L5 (col at PROB_LANE)
    out_ref,
):
    x = x_ref[...]                                                  # (TB, 128) bf16

    # ----- detector hidden layer 0 (SELU, f32 accumulate, bf16 matmul feeds) --
    h0_f = _selu(jnp.dot(x, w0_ref[...], preferred_element_type=jnp.float32)
                 + b0_ref[...])
    h0 = h0_f.astype(jnp.bfloat16)                                  # (TB, 256)

    # ----- fused matmul 1: h0 @ [W1 | AW0a]  ->  (TB, 384) --------------------
    f1 = (jnp.dot(h0, w1f_ref[...], preferred_element_type=jnp.float32)
          + b1f_ref[...])
    h1_f = _selu(f1[:, :H_PAD])                                     # (TB, 256)
    h1 = h1_f.astype(jnp.bfloat16)
    a_h0 = f1[:, H_PAD:]                              # alarm-L0 h0 partial (+ab0)

    # ----- fused matmul 2: h1 @ [W2 | AW0b]  ->  (TB, 256) --------------------
    f2 = (jnp.dot(h1, w2f_ref[...], preferred_element_type=jnp.float32)
          + b2f_ref[...])
    logits = f2[:, :128]                              # lanes 0..N_CLASSES-1 used
    a = jnp.maximum(a_h0 + f2[:, 128:], 0.0)          # alarm L0 output (TB, 128)

    # ----- alarm hidden layers L1..L4 (ReLU) ----------------------------------
    for w_ref, b_ref in ((aw1_ref, ab1_ref), (aw2_ref, ab2_ref),
                         (aw3_ref, ab3_ref), (aw4_ref, ab4_ref)):
        a = jnp.maximum(
            jnp.dot(a.astype(jnp.bfloat16), w_ref[...],
                    preferred_element_type=jnp.float32) + b_ref[...], 0.0)

    # last alarm layer: its single real column was pre-placed at lane PROB_LANE,
    # so logits + prob packs everything into one lane-dense slab.
    prob = (jnp.dot(a.astype(jnp.bfloat16), aw5_ref[...],
                    preferred_element_type=jnp.float32) + ab5_ref[...])

    out_ref[...] = (logits + prob).astype(out_ref.dtype)            # (TB, 128)


# ---------------------------------------------------------------------------
# Parameter preparation: pad every feature dim to a multiple of 128, cast
# weights to bf16, keep biases f32, fuse the shared-LHS matmuls
# ([W1 | AW0a] and [W2 | AW0b]), and place the final alarm column at lane
# PROB_LANE of a 128-wide padded output.
# ---------------------------------------------------------------------------
def _pad_w(w, col_offset=0):
    r, c = _rup(w.shape[0]), _rup(w.shape[1] + col_offset)
    out = jnp.zeros((r, c), jnp.bfloat16)
    return out.at[:w.shape[0], col_offset:col_offset + w.shape[1]].set(
        w.astype(jnp.bfloat16))


def _pad_b(b, col_offset=0):
    c = _rup(b.shape[0] + col_offset)
    out = jnp.zeros((1, c), jnp.float32)
    return out.at[0, col_offset:col_offset + b.shape[0]].set(b.astype(jnp.float32))


def prepare_params(params):
    (w0, b0), (w1, b1), (w2, b2) = params[:3]
    alarm = params[3:]
    aw0, ab0 = alarm[0]
    h0_dim = DENSE_HIDDEN_UNITS[0]
    aw0a, aw0b = aw0[:h0_dim], aw0[h0_dim:]           # replaces the concat([h0,h1])

    # Fused weights / biases sharing an LHS:
    #   h0 @ [W1 | AW0a] : (256, 256+128) ; h1 @ [W2 | AW0b] : (256, 128+128)
    w1f = jnp.concatenate([_pad_w(w1), _pad_w(aw0a)], axis=1)       # (256, 384)
    b1f = jnp.concatenate([_pad_b(b1), _pad_b(ab0)], axis=1)        # (1, 384)
    w2f = jnp.concatenate([_pad_w(w2), _pad_w(aw0b)], axis=1)       # (256, 256)
    b2f = jnp.concatenate([_pad_b(b2), jnp.zeros((1, 128), jnp.float32)], axis=1)

    prepped = [_pad_w(w0), _pad_b(b0), w1f, b1f, w2f, b2f]
    for w, b in alarm[1:-1]:
        prepped += [_pad_w(w), _pad_b(b)]
    aw5, ab5 = alarm[-1]
    prepped += [_pad_w(aw5, col_offset=PROB_LANE), _pad_b(ab5, col_offset=PROB_LANE)]
    return prepped


# ---------------------------------------------------------------------------
# Wrapper: batch grid, resident weights, lane-dense packed bf16 output slab
# ---------------------------------------------------------------------------
def _default_tile_rows():
    """Generation-aware batch tile: 512 on v5e (1 vst slot, 16 MiB scoped VMEM
    default), 1024 elsewhere (v6e/v7x: amortizes grid-step overhead, still well
    under the v7x 64 MiB VMEM with f32 intermediates)."""
    try:
        kind = jax.devices()[0].device_kind.lower()
    except Exception:
        return 512
    if "v5" in kind and ("lite" in kind or "5e" in kind):
        return 512
    return 1024


@functools.partial(jax.jit, static_argnames=("tb",))
def _dla_forward_impl(x, params, tb):
    batch = x.shape[0]
    rows = _rup(batch, 16)                    # bf16 packs 2 rows / sublane
    tb_eff = min(tb, rows)
    # Mid-size batches: split into >= 2 grid steps so the "parallel" axis can
    # feed both TensorCores on v7x instead of leaving one idle.
    if tb_eff < rows < 2 * tb_eff:
        tb_eff = _rup(pl.cdiv(rows, 2), 16)
    padded_b = _rup(batch, tb_eff)

    x_p = jnp.zeros((padded_b, INPUT_SIZE), jnp.bfloat16).at[:batch].set(
        x.astype(jnp.bfloat16))
    prepped = prepare_params(params)

    grid = (padded_b // tb_eff,)
    x_spec = pl.BlockSpec((tb_eff, INPUT_SIZE), lambda i: (i, 0))
    # weights/biases: full-array blocks with a constant index_map -> resident
    # in VMEM across all grid steps (no re-DMA).
    weight_specs = [pl.BlockSpec(p.shape, lambda i: (0, 0)) for p in prepped]
    out_spec = pl.BlockSpec((tb_eff, 128), lambda i: (i, 0))

    # Advisory cost estimate (padded dims, bf16 matmuls, f32 accumulate).
    matmul_elems = sum(int(p.size) for p in prepped if p.shape[0] > 1)
    param_bytes = sum(int(p.size) * p.dtype.itemsize for p in prepped)
    cost = pl.CostEstimate(
        flops=2 * padded_b * matmul_elems,
        transcendentals=padded_b * 2 * H_PAD,                # SELU exps (padded)
        bytes_accessed=(padded_b * INPUT_SIZE * 2            # bf16 activations in
                        + param_bytes
                        + padded_b * 128 * 2))               # bf16 output slab

    slab = pl.pallas_call(
        _dla_kernel,
        out_shape=jax.ShapeDtypeStruct((padded_b, 128), jnp.bfloat16),
        grid=grid,
        in_specs=[x_spec] + weight_specs,
        out_specs=out_spec,
        compiler_params=pltpu.CompilerParams(
            dimension_semantics=("parallel",),
            # Explicit headroom: v5e scoped default is only 16 MiB; 32 MiB fits
            # every generation's physical VMEM (v7x: 64 MiB).
            vmem_limit_bytes=32 << 20),
        cost_estimate=cost,
    )(x_p, *prepped)

    logits = slab[:batch, :N_CLASSES].astype(jnp.float32)
    x_prob = slab[:batch, PROB_LANE].astype(jnp.float32)
    return logits, x_prob


def dla_forward(x, params, tb=None):
    """Returns (logits (B, n_classes), x_prob (B,)) — matches module.forward."""
    if tb is None:
        tb = _default_tile_rows()
    return _dla_forward_impl(x, params, tb)


# ---------------------------------------------------------------------------
# Deterministic parameter construction (synthetic weights, no checkpoint load)
# ---------------------------------------------------------------------------
def make_params(key):
    dims = ([INPUT_SIZE] + DENSE_HIDDEN_UNITS + [N_CLASSES],   # detector DNN
            ALARM_DIMS)                                        # alarm MLP
    params = []
    for layer_dims in dims:
        for d_in, d_out in zip(layer_dims[:-1], layer_dims[1:]):
            key, kw, kb = jax.random.split(key, 3)
            w = jax.random.normal(kw, (d_in, d_out), jnp.float32) * 0.05
            b = jax.random.normal(kb, (d_out,), jnp.float32) * 0.05
            params.append((w, b))
    return params


# ---------------------------------------------------------------------------
# Pure-JAX f32 reference (for correctness check)
# ---------------------------------------------------------------------------
def dla_forward_ref(x, params):
    (w0, b0), (w1, b1), (w2, b2) = params[:3]
    h0 = _selu(x @ w0 + b0)
    h1 = _selu(h0 @ w1 + b1)
    logits = h1 @ w2 + b2
    a = jnp.concatenate([h0, h1], axis=-1)
    alarm = params[3:]
    for i, (w, b) in enumerate(alarm):
        a = a @ w + b
        if i < len(alarm) - 1:
            a = jnp.maximum(a, 0.0)
    return logits, a.reshape(-1)


if __name__ == "__main__":
    key = jax.random.PRNGKey(0)
    key, kx = jax.random.split(key)

    batch = 8
    x = jax.random.normal(kx, (batch, INPUT_SIZE), jnp.float32)
    params = make_params(key)

    logits, x_prob = dla_forward(x, params)
    jax.block_until_ready((logits, x_prob))

    ref_logits, ref_prob = dla_forward_ref(x, params)
    assert logits.shape == (batch, N_CLASSES)
    assert x_prob.shape == (batch,)
    # bf16 matmul feeds / bf16 output slab -> looser tolerance vs f32 reference
    assert jnp.allclose(logits, ref_logits, atol=5e-2, rtol=5e-2)
    assert jnp.allclose(x_prob, ref_prob, atol=5e-2, rtol=5e-2)

    print("KERNEL_OK")
</pallas_src>

<mosaic_0001>
module attributes {stable_mosaic.version = 11 : i64} {
  func.func @_dla_kernel(%arg0: i32, %arg1: memref<16x128xbf16, #tpu.memory_space<vmem>>, %arg2: memref<128x256xbf16, #tpu.memory_space<vmem>>, %arg3: memref<1x256xf32, #tpu.memory_space<vmem>>, %arg4: memref<256x384xbf16, #tpu.memory_space<vmem>>, %arg5: memref<1x384xf32, #tpu.memory_space<vmem>>, %arg6: memref<256x256xbf16, #tpu.memory_space<vmem>>, %arg7: memref<1x256xf32, #tpu.memory_space<vmem>>, %arg8: memref<128x128xbf16, #tpu.memory_space<vmem>>, %arg9: memref<1x128xf32, #tpu.memory_space<vmem>>, %arg10: memref<128x384xbf16, #tpu.memory_space<vmem>>, %arg11: memref<1x384xf32, #tpu.memory_space<vmem>>, %arg12: memref<384x256xbf16, #tpu.memory_space<vmem>>, %arg13: memref<1x256xf32, #tpu.memory_space<vmem>>, %arg14: memref<256x128xbf16, #tpu.memory_space<vmem>>, %arg15: memref<1x128xf32, #tpu.memory_space<vmem>>, %arg16: memref<128x128xbf16, #tpu.memory_space<vmem>>, %arg17: memref<1x128xf32, #tpu.memory_space<vmem>>, %arg18: memref<16x128xbf16, #tpu.memory_space<vmem>>) attributes {dimension_semantics = [#tpu.dimension_semantics<parallel>], iteration_bounds = array<i64: 1>, scalar_prefetch = 0 : i64, scratch_operands = 0 : i64, tpu.core_type = #tpu.core_type<tc>, window_params = [{transform_indices = @transform_0, window_bounds = array<i64: 16, 128>}, {pipeline_mode = #tpu.pipeline_mode<synchronous>, transform_indices = @transform_1, window_bounds = array<i64: 128, 256>}, {pipeline_mode = #tpu.pipeline_mode<synchronous>, transform_indices = @transform_2, window_bounds = array<i64: 1, 256>}, {pipeline_mode = #tpu.pipeline_mode<synchronous>, transform_indices = @transform_3, window_bounds = array<i64: 256, 384>}, {pipeline_mode = #tpu.pipeline_mode<synchronous>, transform_indices = @transform_4, window_bounds = array<i64: 1, 384>}, {pipeline_mode = #tpu.pipeline_mode<synchronous>, transform_indices = @transform_5, window_bounds = array<i64: 256, 256>}, {pipeline_mode = #tpu.pipeline_mode<synchronous>, transform_indices = @transform_6, window_bounds = array<i64: 1, 256>}, {pipeline_mode = #tpu.pipeline_mode<synchronous>, transform_indices = @transform_7, window_bounds = array<i64: 128, 128>}, {pipeline_mode = #tpu.pipeline_mode<synchronous>, transform_indices = @transform_8, window_bounds = array<i64: 1, 128>}, {pipeline_mode = #tpu.pipeline_mode<synchronous>, transform_indices = @transform_9, window_bounds = array<i64: 128, 384>}, {pipeline_mode = #tpu.pipeline_mode<synchronous>, transform_indices = @transform_10, window_bounds = array<i64: 1, 384>}, {pipeline_mode = #tpu.pipeline_mode<synchronous>, transform_indices = @transform_11, window_bounds = array<i64: 384, 256>}, {pipeline_mode = #tpu.pipeline_mode<synchronous>, transform_indices = @transform_12, window_bounds = array<i64: 1, 256>}, {pipeline_mode = #tpu.pipeline_mode<synchronous>, transform_indices = @transform_13, window_bounds = array<i64: 256, 128>}, {pipeline_mode = #tpu.pipeline_mode<synchronous>, transform_indices = @transform_14, window_bounds = array<i64: 1, 128>}, {pipeline_mode = #tpu.pipeline_mode<synchronous>, transform_indices = @transform_15, window_bounds = array<i64: 128, 128>}, {pipeline_mode = #tpu.pipeline_mode<synchronous>, transform_indices = @transform_16, window_bounds = array<i64: 1, 128>}, {transform_indices = @transform_17, window_bounds = array<i64: 16, 128>}]} {
    %c0 = arith.constant 0 : index
    %c0_0 = arith.constant 0 : index
    %0 = vector.load %arg1[%c0, %c0_0] : memref<16x128xbf16, #tpu.memory_space<vmem>>, vector<16x128xbf16>
    %c0_1 = arith.constant 0 : index
    %c0_2 = arith.constant 0 : index
    %1 = vector.load %arg2[%c0_1, %c0_2] : memref<128x256xbf16, #tpu.memory_space<vmem>>, vector<128x256xbf16>
    %cst = arith.constant dense<0.000000e+00> : vector<16x256xf32>
    %2 = tpu.matmul %0, %1, %cst {dimension_numbers = #tpu.dot_dimension_numbers<[1], [0], [0], [1], [0, 0, 1, 1], [], []>} : vector<16x128xbf16>, vector<128x256xbf16>, vector<16x256xf32> -> vector<16x256xf32>
    %c0_3 = arith.constant 0 : index
    %c0_4 = arith.constant 0 : index
    %3 = vector.load %arg3[%c0_3, %c0_4] : memref<1x256xf32, #tpu.memory_space<vmem>>, vector<1x256xf32>
    %4 = vector.broadcast %3 : vector<1x256xf32> to vector<16x256xf32>
    %5 = arith.addf %2, %4 : vector<16x256xf32>
    %cst_5 = arith.constant 0.000000e+00 : f32
    %6 = vector.broadcast %cst_5 : f32 to vector<16x256xf32>
    %7 = arith.cmpf ogt, %5, %6 : vector<16x256xf32>
    %8 = math.exp %5 : vector<16x256xf32>
    %cst_6 = arith.constant 1.000000e+00 : f32
    %9 = vector.broadcast %cst_6 : f32 to vector<16x256xf32>
    %10 = arith.subf %8, %9 : vector<16x256xf32>
    %cst_7 = arith.constant 1.67326319 : f32
    %11 = vector.broadcast %cst_7 : f32 to vector<16x256xf32>
    %12 = arith.mulf %11, %10 : vector<16x256xf32>
    %13 = arith.select %7, %5, %12 : vector<16x256xi1>, vector<16x256xf32>
    %cst_8 = arith.constant 1.05070102 : f32
    %14 = vector.broadcast %cst_8 : f32 to vector<16x256xf32>
    %15 = arith.mulf %14, %13 : vector<16x256xf32>
    %16 = arith.truncf %15 : vector<16x256xf32> to vector<16x256xbf16>
    %c0_9 = arith.constant 0 : index
    %c0_10 = arith.constant 0 : index
    %17 = vector.load %arg4[%c0_9, %c0_10] : memref<256x384xbf16, #tpu.memory_space<vmem>>, vector<256x384xbf16>
    %cst_11 = arith.constant dense<0.000000e+00> : vector<16x384xf32>
    %18 = tpu.matmul %16, %17, %cst_11 {dimension_numbers = #tpu.dot_dimension_numbers<[1], [0], [0], [1], [0, 0, 1, 1], [], []>} : vector<16x256xbf16>, vector<256x384xbf16>, vector<16x384xf32> -> vector<16x384xf32>
    %c0_12 = arith.constant 0 : index
    %c0_13 = arith.constant 0 : index
    %19 = vector.load %arg5[%c0_12, %c0_13] : memref<1x384xf32, #tpu.memory_space<vmem>>, vector<1x384xf32>
    %20 = vector.broadcast %19 : vector<1x384xf32> to vector<16x384xf32>
    %21 = arith.addf %18, %20 : vector<16x384xf32>
    %22 = vector.extract_strided_slice %21 {offsets = [0, 0], sizes = [16, 256], strides = [1, 1]} : vector<16x384xf32> to vector<16x256xf32>
    %cst_14 = arith.constant 0.000000e+00 : f32
    %23 = vector.broadcast %cst_14 : f32 to vector<16x256xf32>
    %24 = arith.cmpf ogt, %22, %23 : vector<16x256xf32>
    %25 = math.exp %22 : vector<16x256xf32>
    %cst_15 = arith.constant 1.000000e+00 : f32
    %26 = vector.broadcast %cst_15 : f32 to vector<16x256xf32>
    %27 = arith.subf %25, %26 : vector<16x256xf32>
    %cst_16 = arith.constant 1.67326319 : f32
    %28 = vector.broadcast %cst_16 : f32 to vector<16x256xf32>
    %29 = arith.mulf %28, %27 : vector<16x256xf32>
    %30 = arith.select %24, %22, %29 : vector<16x256xi1>, vector<16x256xf32>
    %cst_17 = arith.constant 1.05070102 : f32
    %31 = vector.broadcast %cst_17 : f32 to vector<16x256xf32>
    %32 = arith.mulf %31, %30 : vector<16x256xf32>
    %33 = arith.truncf %32 : vector<16x256xf32> to vector<16x256xbf16>
    %34 = vector.extract_strided_slice %21 {offsets = [0, 256], sizes = [16, 128], strides = [1, 1]} : vector<16x384xf32> to vector<16x128xf32>
    %c0_18 = arith.constant 0 : index
    %c0_19 = arith.constant 0 : index
    %35 = vector.load %arg6[%c0_18, %c0_19] : memref<256x256xbf16, #tpu.memory_space<vmem>>, vector<256x256xbf16>
    %cst_20 = arith.constant dense<0.000000e+00> : vector<16x256xf32>
    %36 = tpu.matmul %33, %35, %cst_20 {dimension_numbers = #tpu.dot_dimension_numbers<[1], [0], [0], [1], [0, 0, 1, 1], [], []>} : vector<16x256xbf16>, vector<256x256xbf16>, vector<16x256xf32> -> vector<16x256xf32>
    %c0_21 = arith.constant 0 : index
    %c0_22 = arith.constant 0 : index
    %37 = vector.load %arg7[%c0_21, %c0_22] : memref<1x256xf32, #tpu.memory_space<vmem>>, vector<1x256xf32>
    %38 = vector.broadcast %37 : vector<1x256xf32> to vector<16x256xf32>
    %39 = arith.addf %36, %38 : vector<16x256xf32>
    %40 = vector.extract_strided_slice %39 {offsets = [0, 0], sizes = [16, 128], strides = [1, 1]} : vector<16x256xf32> to vector<16x128xf32>
    %41 = vector.extract_strided_slice %39 {offsets = [0, 128], sizes = [16, 128], strides = [1, 1]} : vector<16x256xf32> to vector<16x128xf32>
    %42 = arith.addf %34, %41 : vector<16x128xf32>
    %cst_23 = arith.constant 0.000000e+00 : f32
    %43 = vector.broadcast %cst_23 : f32 to vector<16x128xf32>
    %44 = arith.maximumf %42, %43 : vector<16x128xf32>
    %45 = arith.truncf %44 : vector<16x128xf32> to vector<16x128xbf16>
    %c0_24 = arith.constant 0 : index
    %c0_25 = arith.constant 0 : index
    %46 = vector.load %arg8[%c0_24, %c0_25] : memref<128x128xbf16, #tpu.memory_space<vmem>>, vector<128x128xbf16>
    %cst_26 = arith.constant dense<0.000000e+00> : vector<16x128xf32>
    %47 = tpu.matmul %45, %46, %cst_26 {dimension_numbers = #tpu.dot_dimension_numbers<[1], [0], [0], [1], [0, 0, 1, 1], [], []>} : vector<16x128xbf16>, vector<128x128xbf16>, vector<16x128xf32> -> vector<16x128xf32>
    %c0_27 = arith.constant 0 : index
    %c0_28 = arith.constant 0 : index
    %48 = vector.load %arg9[%c0_27, %c0_28] : memref<1x128xf32, #tpu.memory_space<vmem>>, vector<1x128xf32>
    %49 = vector.broadcast %48 : vector<1x128xf32> to vector<16x128xf32>
    %50 = arith.addf %47, %49 : vector<16x128xf32>
    %cst_29 = arith.constant 0.000000e+00 : f32
    %51 = vector.broadcast %cst_29 : f32 to vector<16x128xf32>
    %52 = arith.maximumf %50, %51 : vector<16x128xf32>
    %53 = arith.truncf %52 : vector<16x128xf32> to vector<16x128xbf16>
    %c0_30 = arith.constant 0 : index
    %c0_31 = arith.constant 0 : index
    %54 = vector.load %arg10[%c0_30, %c0_31] : memref<128x384xbf16, #tpu.memory_space<vmem>>, vector<128x384xbf16>
    %cst_32 = arith.constant dense<0.000000e+00> : vector<16x384xf32>
    %55 = tpu.matmul %53, %54, %cst_32 {dimension_numbers = #tpu.dot_dimension_numbers<[1], [0], [0], [1], [0, 0, 1, 1], [], []>} : vector<16x128xbf16>, vector<128x384xbf16>, vector<16x384xf32> -> vector<16x384xf32>
    %c0_33 = arith.constant 0 : index
    %c0_34 = arith.constant 0 : index
    %56 = vector.load %arg11[%c0_33, %c0_34] : memref<1x384xf32, #tpu.memory_space<vmem>>, vector<1x384xf32>
    %57 = vector.broadcast %56 : vector<1x384xf32> to vector<16x384xf32>
    %58 = arith.addf %55, %57 : vector<16x384xf32>
    %cst_35 = arith.constant 0.000000e+00 : f32
    %59 = vector.broadcast %cst_35 : f32 to vector<16x384xf32>
    %60 = arith.maximumf %58, %59 : vector<16x384xf32>
    %61 = arith.truncf %60 : vector<16x384xf32> to vector<16x384xbf16>
    %c0_36 = arith.constant 0 : index
    %c0_37 = arith.constant 0 : index
    %62 = vector.load %arg12[%c0_36, %c0_37] : memref<384x256xbf16, #tpu.memory_space<vmem>>, vector<384x256xbf16>
    %cst_38 = arith.constant dense<0.000000e+00> : vector<16x256xf32>
    %63 = tpu.matmul %61, %62, %cst_38 {dimension_numbers = #tpu.dot_dimension_numbers<[1], [0], [0], [1], [0, 0, 1, 1], [], []>} : vector<16x384xbf16>, vector<384x256xbf16>, vector<16x256xf32> -> vector<16x256xf32>
    %c0_39 = arith.constant 0 : index
    %c0_40 = arith.constant 0 : index
    %64 = vector.load %arg13[%c0_39, %c0_40] : memref<1x256xf32, #tpu.memory_space<vmem>>, vector<1x256xf32>
    %65 = vector.broadcast %64 : vector<1x256xf32> to vector<16x256xf32>
    %66 = arith.addf %63, %65 : vector<16x256xf32>
    %cst_41 = arith.constant 0.000000e+00 : f32
    %67 = vector.broadcast %cst_41 : f32 to vector<16x256xf32>
    %68 = arith.maximumf %66, %67 : vector<16x256xf32>
    %69 = arith.truncf %68 : vector<16x256xf32> to vector<16x256xbf16>
    %c0_42 = arith.constant 0 : index
    %c0_43 = arith.constant 0 : index
    %70 = vector.load %arg14[%c0_42, %c0_43] : memref<256x128xbf16, #tpu.memory_space<vmem>>, vector<256x128xbf16>
    %cst_44 = arith.constant dense<0.000000e+00> : vector<16x128xf32>
    %71 = tpu.matmul %69, %70, %cst_44 {dimension_numbers = #tpu.dot_dimension_numbers<[1], [0], [0], [1], [0, 0, 1, 1], [], []>} : vector<16x256xbf16>, vector<256x128xbf16>, vector<16x128xf32> -> vector<16x128xf32>
    %c0_45 = arith.constant 0 : index
    %c0_46 = arith.constant 0 : index
    %72 = vector.load %arg15[%c0_45, %c0_46] : memref<1x128xf32, #tpu.memory_space<vmem>>, vector<1x128xf32>
    %73 = vector.broadcast %72 : vector<1x128xf32> to vector<16x128xf32>
    %74 = arith.addf %71, %73 : vector<16x128xf32>
    %cst_47 = arith.constant 0.000000e+00 : f32
    %75 = vector.broadcast %cst_47 : f32 to vector<16x128xf32>
    %76 = arith.maximumf %74, %75 : vector<16x128xf32>
    %77 = arith.truncf %76 : vector<16x128xf32> to vector<16x128xbf16>
    %c0_48 = arith.constant 0 : index
    %c0_49 = arith.constant 0 : index
    %78 = vector.load %arg16[%c0_48, %c0_49] : memref<128x128xbf16, #tpu.memory_space<vmem>>, vector<128x128xbf16>
    %cst_50 = arith.constant dense<0.000000e+00> : vector<16x128xf32>
    %79 = tpu.matmul %77, %78, %cst_50 {dimension_numbers = #tpu.dot_dimension_numbers<[1], [0], [0], [1], [0, 0, 1, 1], [], []>} : vector<16x128xbf16>, vector<128x128xbf16>, vector<16x128xf32> -> vector<16x128xf32>
    %c0_51 = arith.constant 0 : index
    %c0_52 = arith.constant 0 : index
    %80 = vector.load %arg17[%c0_51, %c0_52] : memref<1x128xf32, #tpu.memory_space<vmem>>, vector<1x128xf32>
    %81 = vector.broadcast %80 : vector<1x128xf32> to vector<16x128xf32>
    %82 = arith.addf %79, %81 : vector<16x128xf32>
    %83 = arith.addf %40, %82 : vector<16x128xf32>
    %84 = arith.truncf %83 : vector<16x128xf32> to vector<16x128xbf16>
    %c0_53 = arith.constant 0 : index
    %c0_54 = arith.constant 0 : index
    %85 = vector.load %arg18[%c0_53, %c0_54] : memref<16x128xbf16, #tpu.memory_space<vmem>>, vector<16x128xbf16>
    tpu.vector_store %arg18[%c0_53, %c0_54], %84 {strides = array<i32>} : memref<16x128xbf16, #tpu.memory_space<vmem>>, vector<16x128xbf16>,
    return
  }
  func.func @transform_0(%arg0: i32) -> (i32, i32) {
    %c0_i32 = arith.constant 0 : i32
    %c0_i32_0 = arith.constant 0 : i32
    return %arg0, %c0_i32 : i32, i32
  }
  func.func @transform_1(%arg0: i32) -> (i32, i32) {
    %c0_i32 = arith.constant 0 : i32
    %c0_i32_0 = arith.constant 0 : i32
    %c0_i32_1 = arith.constant 0 : i32
    return %c0_i32, %c0_i32_0 : i32, i32
  }
  func.func @transform_2(%arg0: i32) -> (i32, i32) {
    %c0_i32 = arith.constant 0 : i32
    %c0_i32_0 = arith.constant 0 : i32
    %c0_i32_1 = arith.constant 0 : i32
    return %c0_i32, %c0_i32_0 : i32, i32
  }
  func.func @transform_3(%arg0: i32) -> (i32, i32) {
    %c0_i32 = arith.constant 0 : i32
    %c0_i32_0 = arith.constant 0 : i32
    %c0_i32_1 = arith.constant 0 : i32
    return %c0_i32, %c0_i32_0 : i32, i32
  }
  func.func @transform_4(%arg0: i32) -> (i32, i32) {
    %c0_i32 = arith.constant 0 : i32
    %c0_i32_0 = arith.constant 0 : i32
    %c0_i32_1 = arith.constant 0 : i32
    return %c0_i32, %c0_i32_0 : i32, i32
  }
  func.func @transform_5(%arg0: i32) -> (i32, i32) {
    %c0_i32 = arith.constant 0 : i32
    %c0_i32_0 = arith.constant 0 : i32
    %c0_i32_1 = arith.constant 0 : i32
    return %c0_i32, %c0_i32_0 : i32, i32
  }
  func.func @transform_6(%arg0: i32) -> (i32, i32) {
    %c0_i32 = arith.constant 0 : i32
    %c0_i32_0 = arith.constant 0 : i32
    %c0_i32_1 = arith.constant 0 : i32
    return %c0_i32, %c0_i32_0 : i32, i32
  }
  func.func @transform_7(%arg0: i32) -> (i32, i32) {
    %c0_i32 = arith.constant 0 : i32
    %c0_i32_0 = arith.constant 0 : i32
    %c0_i32_1 = arith.constant 0 : i32
    return %c0_i32, %c0_i32_0 : i32, i32
  }
  func.func @transform_8(%arg0: i32) -> (i32, i32) {
    %c0_i32 = arith.constant 0 : i32
    %c0_i32_0 = arith.constant 0 : i32
    %c0_i32_1 = arith.constant 0 : i32
    return %c0_i32, %c0_i32_0 : i32, i32
  }
  func.func @transform_9(%arg0: i32) -> (i32, i32) {
    %c0_i32 = arith.constant 0 : i32
    %c0_i32_0 = arith.constant 0 : i32
    %c0_i32_1 = arith.constant 0 : i32
    return %c0_i32, %c0_i32_0 : i32, i32
  }
  func.func @transform_10(%arg0: i32) -> (i32, i32) {
    %c0_i32 = arith.constant 0 : i32
    %c0_i32_0 = arith.constant 0 : i32
    %c0_i32_1 = arith.constant 0 : i32
    return %c0_i32, %c0_i32_0 : i32, i32
  }
  func.func @transform_11(%arg0: i32) -> (i32, i32) {
    %c0_i32 = arith.constant 0 : i32
    %c0_i32_0 = arith.constant 0 : i32
    %c0_i32_1 = arith.constant 0 : i32
    return %c0_i32, %c0_i32_0 : i32, i32
  }
  func.func @transform_12(%arg0: i32) -> (i32, i32) {
    %c0_i32 = arith.constant 0 : i32
    %c0_i32_0 = arith.constant 0 : i32
    %c0_i32_1 = arith.constant 0 : i32
    return %c0_i32, %c0_i32_0 : i32, i32
  }
  func.func @transform_13(%arg0: i32) -> (i32, i32) {
    %c0_i32 = arith.constant 0 : i32
    %c0_i32_0 = arith.constant 0 : i32
    %c0_i32_1 = arith.constant 0 : i32
    return %c0_i32, %c0_i32_0 : i32, i32
  }
  func.func @transform_14(%arg0: i32) -> (i32, i32) {
    %c0_i32 = arith.constant 0 : i32
    %c0_i32_0 = arith.constant 0 : i32
    %c0_i32_1 = arith.constant 0 : i32
    return %c0_i32, %c0_i32_0 : i32, i32
  }
  func.func @transform_15(%arg0: i32) -> (i32, i32) {
    %c0_i32 = arith.constant 0 : i32
    %c0_i32_0 = arith.constant 0 : i32
    %c0_i32_1 = arith.constant 0 : i32
    return %c0_i32, %c0_i32_0 : i32, i32
  }
  func.func @transform_16(%arg0: i32) -> (i32, i32) {
    %c0_i32 = arith.constant 0 : i32
    %c0_i32_0 = arith.constant 0 : i32
    %c0_i32_1 = arith.constant 0 : i32
    return %c0_i32, %c0_i32_0 : i32, i32
  }
  func.func @transform_17(%arg0: i32) -> (i32, i32) {
    %c0_i32 = arith.constant 0 : i32
    %c0_i32_0 = arith.constant 0 : i32
    return %arg0, %c0_i32 : i32, i32
  }
}

</mosaic_0001>

<llo_original>
// kernel: _dla_forward_impl.1
$region0: #{_dla_forward_impl.1}
  #allocation0 [shape = 'u32[]', space=smem, size = 0x4, offset = 0x4, fixed_abs, tag = 'smem constant byte address 0x4 - core index']
  #allocation1 [shape = 'u32[72,128]{1,0:T(1,128)}', space=vmem, size = 0x9000, scoped, tag = 'internal scratch']
  %s0 = inlined_call_operand.vmem [shape: bf16[16,128], index: 0, kind: input, shape index: {}]
  %s1 = inlined_call_operand.vmem [shape: bf16[128,256], index: 1, kind: input, shape index: {}]
  %s2 = inlined_call_operand.vmem [shape: f32[1,256], index: 2, kind: input, shape index: {}]
  %s3 = inlined_call_operand.vmem [shape: bf16[256,384], index: 3, kind: input, shape index: {}]
  %s4 = inlined_call_operand.vmem [shape: f32[1,384], index: 4, kind: input, shape index: {}]
  %s5 = inlined_call_operand.vmem [shape: bf16[256,256], index: 5, kind: input, shape index: {}]
  %s6 = inlined_call_operand.vmem [shape: f32[1,256], index: 6, kind: input, shape index: {}]
  %s7 = inlined_call_operand.vmem [shape: bf16[128,128], index: 7, kind: input, shape index: {}]
  %s8 = inlined_call_operand.vmem [shape: f32[1,128], index: 8, kind: input, shape index: {}]
  %s9 = inlined_call_operand.vmem [shape: bf16[128,384], index: 9, kind: input, shape index: {}]
  %s10 = inlined_call_operand.vmem [shape: f32[1,384], index: 10, kind: input, shape index: {}]
  %s11 = inlined_call_operand.vmem [shape: bf16[384,256], index: 11, kind: input, shape index: {}]
  %s12 = inlined_call_operand.vmem [shape: f32[1,256], index: 12, kind: input, shape index: {}]
  %s13 = inlined_call_operand.vmem [shape: bf16[256,128], index: 13, kind: input, shape index: {}]
  %s14 = inlined_call_operand.vmem [shape: f32[1,128], index: 14, kind: input, shape index: {}]
  %s15 = inlined_call_operand.vmem [shape: bf16[128,128], index: 15, kind: input, shape index: {}]
  %s16 = inlined_call_operand.vmem [shape: f32[1,128], index: 16, kind: input, shape index: {}]
  %s17 = inlined_call_operand.vmem [shape: bf16[16,128], index: 17, kind: output, shape index: {}]
  %s18 = sld [smem:[#allocation0]]
  $region78: #{_dla_forward_impl.1} parent=0
    _
  %s20 = ssub.s32 1, %s18
  %s21 = scalar_select 0, %s20, %s18
  // Predicated region
  $region2: #{_dla_forward_impl.1} parent=0 // pred_check
    _
  $region3: #{_dla_forward_impl.1} parent=0 // pred_check_branch
    %23 = sbr.rel (0) target = $region5
  $region4: #{_dla_forward_impl.1} parent=0 // pred_region
    _
  $region5: #{_dla_forward_impl.1} parent=0 // pred_fallthru
    _
  // Predicated region
  $region6: #{_dla_forward_impl.1} parent=0 // pred_check
    _
  $region7: #{_dla_forward_impl.1} parent=0 // pred_check_branch
    %25 = sbr.rel (0) target = $region9
  $region8: #{_dla_forward_impl.1} parent=0 // pred_region
    _
  $region9: #{_dla_forward_impl.1} parent=0 // pred_fallthru
    _
  // Predicated region
  $region10: #{_dla_forward_impl.1} parent=0 // pred_check
    _
  $region11: #{_dla_forward_impl.1} parent=0 // pred_check_branch
    %27 = sbr.rel (0) target = $region13
  $region12: #{_dla_forward_impl.1} parent=0 // pred_region
    _
  $region13: #{_dla_forward_impl.1} parent=0 // pred_fallthru
    _
  // Predicated region
  $region14: #{_dla_forward_impl.1} parent=0 // pred_check
    _
  $region15: #{_dla_forward_impl.1} parent=0 // pred_check_branch
    %29 = sbr.rel (0) target = $region17
  $region16: #{_dla_forward_impl.1} parent=0 // pred_region
    _
  $region17: #{_dla_forward_impl.1} parent=0 // pred_fallthru
    _
  // Predicated region
  $region18: #{_dla_forward_impl.1} parent=0 // pred_check
    _
  $region19: #{_dla_forward_impl.1} parent=0 // pred_check_branch
    %31 = sbr.rel (0) target = $region21
  $region20: #{_dla_forward_impl.1} parent=0 // pred_region
    _
  $region21: #{_dla_forward_impl.1} parent=0 // pred_fallthru
    _
  // Predicated region
  $region22: #{_dla_forward_impl.1} parent=0 // pred_check
    _
  $region23: #{_dla_forward_impl.1} parent=0 // pred_check_branch
    %33 = sbr.rel (0) target = $region25
  $region24: #{_dla_forward_impl.1} parent=0 // pred_region
    _
  $region25: #{_dla_forward_impl.1} parent=0 // pred_fallthru
    _
  // Predicated region
  $region26: #{_dla_forward_impl.1} parent=0 // pred_check
    _
  $region27: #{_dla_forward_impl.1} parent=0 // pred_check_branch
    %35 = sbr.rel (0) target = $region29
  $region28: #{_dla_forward_impl.1} parent=0 // pred_region
    _
  $region29: #{_dla_forward_impl.1} parent=0 // pred_fallthru
    _
  // Predicated region
  $region30: #{_dla_forward_impl.1} parent=0 // pred_check
    _
  $region31: #{_dla_forward_impl.1} parent=0 // pred_check_branch
    %37 = sbr.rel (0) target = $region33
  $region32: #{_dla_forward_impl.1} parent=0 // pred_region
    _
  $region33: #{_dla_forward_impl.1} parent=0 // pred_fallthru
    _
  // Predicated region
  $region34: #{_dla_forward_impl.1} parent=0 // pred_check
    _
  $region35: #{_dla_forward_impl.1} parent=0 // pred_check_branch
    %39 = sbr.rel (0) target = $region37
  $region36: #{_dla_forward_impl.1} parent=0 // pred_region
    _
  $region37: #{_dla_forward_impl.1} parent=0 // pred_fallthru
    _
  // Predicated region
  $region38: #{_dla_forward_impl.1} parent=0 // pred_check
    _
  $region39: #{_dla_forward_impl.1} parent=0 // pred_check_branch
    %41 = sbr.rel (0) target = $region41
  $region40: #{_dla_forward_impl.1} parent=0 // pred_region
    _
  $region41: #{_dla_forward_impl.1} parent=0 // pred_fallthru
    _
  // Predicated region
  $region42: #{_dla_forward_impl.1} parent=0 // pred_check
    _
  $region43: #{_dla_forward_impl.1} parent=0 // pred_check_branch
    %43 = sbr.rel (0) target = $region45
  $region44: #{_dla_forward_impl.1} parent=0 // pred_region
    _
  $region45: #{_dla_forward_impl.1} parent=0 // pred_fallthru
    _
  // Predicated region
  $region46: #{_dla_forward_impl.1} parent=0 // pred_check
    _
  $region47: #{_dla_forward_impl.1} parent=0 // pred_check_branch
    %45 = sbr.rel (0) target = $region49
  $region48: #{_dla_forward_impl.1} parent=0 // pred_region
    _
  $region49: #{_dla_forward_impl.1} parent=0 // pred_fallthru
    _
  // Predicated region
  $region50: #{_dla_forward_impl.1} parent=0 // pred_check
    _
  $region51: #{_dla_forward_impl.1} parent=0 // pred_check_branch
    %47 = sbr.rel (0) target = $region53
  $region52: #{_dla_forward_impl.1} parent=0 // pred_region
    _
  $region53: #{_dla_forward_impl.1} parent=0 // pred_fallthru
    _
  // Predicated region
  $region54: #{_dla_forward_impl.1} parent=0 // pred_check
    _
  $region55: #{_dla_forward_impl.1} parent=0 // pred_check_branch
    %49 = sbr.rel (0) target = $region57
  $region56: #{_dla_forward_impl.1} parent=0 // pred_region
    _
  $region57: #{_dla_forward_impl.1} parent=0 // pred_fallthru
    _
  // Predicated region
  $region58: #{_dla_forward_impl.1} parent=0 // pred_check
    _
  $region59: #{_dla_forward_impl.1} parent=0 // pred_check_branch
    %51 = sbr.rel (0) target = $region61
  $region60: #{_dla_forward_impl.1} parent=0 // pred_region
    _
  $region61: #{_dla_forward_impl.1} parent=0 // pred_fallthru
    _
  // Predicated region
  $region62: #{_dla_forward_impl.1} parent=0 // pred_check
    _
  $region63: #{_dla_forward_impl.1} parent=0 // pred_check_branch
    %53 = sbr.rel (0) target = $region65
  $region64: #{_dla_forward_impl.1} parent=0 // pred_region
    _
  $region65: #{_dla_forward_impl.1} parent=0 // pred_fallthru
    _
  // Predicated region
  $region66: #{_dla_forward_impl.1} parent=0 // pred_check
    _
  $region67: #{_dla_forward_impl.1} parent=0 // pred_check_branch
    %55 = sbr.rel (0) target = $region69
  $region68: #{_dla_forward_impl.1} parent=0 // pred_region
    _
  $region69: #{_dla_forward_impl.1} parent=0 // pred_fallthru
    _
  %v56 = vld [vmem:[%s0] sm:$0xf]
  %v57 = vld [vmem:[%s0 + $0x4] sm:$0xf]
  %v58 = vld [vmem:[%s1] sm:$0xff]
  %v59 = vld [vmem:[%s1 + $0x8] sm:$0xff]
  %v60 = vld [vmem:[%s1 + $0x10] sm:$0xff]
  %v61 = vld [vmem:[%s1 + $0x18] sm:$0xff]
  %v62 = vld [vmem:[%s1 + $0x20] sm:$0xff]
  %v63 = vld [vmem:[%s1 + $0x28] sm:$0xff]
  %v64 = vld [vmem:[%s1 + $0x30] sm:$0xff]
  %v65 = vld [vmem:[%s1 + $0x38] sm:$0xff]
  %v66 = vld [vmem:[%s1 + $0x40] sm:$0xff]
  %v67 = vld [vmem:[%s1 + $0x48] sm:$0xff]
  %v68 = vld [vmem:[%s1 + $0x50] sm:$0xff]
  %v69 = vld [vmem:[%s1 + $0x58] sm:$0xff]
  %v70 = vld [vmem:[%s1 + $0x60] sm:$0xff]
  %v71 = vld [vmem:[%s1 + $0x68] sm:$0xff]
  %v72 = vld [vmem:[%s1 + $0x70] sm:$0xff]
  %v73 = vld [vmem:[%s1 + $0x78] sm:$0xff]
  %v74 = vld [vmem:[%s2] sm:$0x3]
  %v76 = vperm.slane %v74, 0
  %v77 = vperm.slane %v74, 1
  %v82 = vunpack.c.l.b16 %v56
  %v83 = vunpack.c.l.b16 %v57
  %v84 = vpack.c.b16 %v83, %v82
  %v102 = vunpack.c.l.b16 %v58
  %v103 = vunpack.c.h.b16 %v58
  %v104 = vunpack.c.l.b16 %v59
  %v105 = vunpack.c.h.b16 %v59
  %v106 = vunpack.c.l.b16 %v60
  %v107 = vunpack.c.h.b16 %v60
  %v108 = vunpack.c.l.b16 %v61
  %v109 = vunpack.c.h.b16 %v61
  %v110 = vunpack.c.l.b16 %v62
  %v111 = vunpack.c.h.b16 %v62
  %v112 = vunpack.c.l.b16 %v63
  %v113 = vunpack.c.h.b16 %v63
  %v114 = vunpack.c.l.b16 %v64
  %v115 = vunpack.c.h.b16 %v64
  %v116 = vunpack.c.l.b16 %v65
  %v117 = vunpack.c.h.b16 %v65
  %v118 = vunpack.c.l.b16 %v66
  %v119 = vunpack.c.h.b16 %v66
  %v120 = vunpack.c.l.b16 %v67
  %v121 = vunpack.c.h.b16 %v67
  %v122 = vunpack.c.l.b16 %v68
  %v123 = vunpack.c.h.b16 %v68
  %v124 = vunpack.c.l.b16 %v69
  %v125 = vunpack.c.h.b16 %v69
  %v126 = vunpack.c.l.b16 %v70
  %v127 = vunpack.c.h.b16 %v70
  %v128 = vunpack.c.l.b16 %v71
  %v129 = vunpack.c.h.b16 %v71
  %v130 = vunpack.c.l.b16 %v72
  %v131 = vunpack.c.h.b16 %v72
  %v132 = vunpack.c.l.b16 %v73
  %v133 = vunpack.c.h.b16 %v73
  %v134 = vpack.c.b16 %v104, %v102
  %v135 = vpack.c.b16 %v105, %v103
  %v136 = vpack.c.b16 %v108, %v106
  %v137 = vpack.c.b16 %v109, %v107
  %v138 = vpack.c.b16 %v112, %v110
  %v139 = vpack.c.b16 %v113, %v111
  %v140 = vpack.c.b16 %v116, %v114
  %v141 = vpack.c.b16 %v117, %v115
  %v142 = vpack.c.b16 %v120, %v118
  %v143 = vpack.c.b16 %v121, %v119
  %v144 = vpack.c.b16 %v124, %v122
  %v145 = vpack.c.b16 %v125, %v123
  %v146 = vpack.c.b16 %v128, %v126
  %v147 = vpack.c.b16 %v129, %v127
  %v148 = vpack.c.b16 %v132, %v130
  %v149 = vpack.c.b16 %v133, %v131
  %166 = vmatpush.bf16.msra.mxu0 %v148
  %167 = vmatpush.bf16.msra.mxu0 %v146
  %168 = vmatpush.bf16.msra.mxu0 %v144
  %169 = vmatpush.bf16.msra.mxu0 %v142
  %170 = vmatpush.bf16.msra.mxu0 %v140
  %171 = vmatpush.bf16.msra.mxu0 %v138
  %172 = vmatpush.bf16.msra.mxu0 %v136
  %173 = vmatpush.bf16.msra.mxu0 %v134
  %174 = vmatmul.bf16.gmra.mxu0 %v84
  %v175 = vpop.f32.mrf.mxu0
  %v176 = vadd.f32 %v76, %v175
  %v177 = vpop.f32.mrf.mxu0
  %v178 = vadd.f32 %v76, %v177
  %179 = vdwg.mxu0
  %180 = vmatpush.bf16.msra.mxu0 %v149
  %181 = vmatpush.bf16.msra.mxu0 %v147
  %182 = vmatpush.bf16.msra.mxu0 %v145
  %183 = vmatpush.bf16.msra.mxu0 %v143
  %184 = vmatpush.bf16.msra.mxu0 %v141
  %185 = vmatpush.bf16.msra.mxu0 %v139
  %186 = vmatpush.bf16.msra.mxu0 %v137
  %187 = vmatpush.bf16.msra.mxu0 %v135
  %188 = vmatmul.bf16.gmra.mxu0 %v84
  %v189 = vpop.f32.mrf.mxu0
  %v190 = vadd.f32 %v77, %v189
  %v191 = vpop.f32.mrf.mxu0
  %v192 = vadd.f32 %v77, %v191
  %193 = vdwg.mxu0
  %vm194 = vcmp.gt.f32.partialorder %v176, 0.0
  %vm195 = vcmp.gt.f32.partialorder %v190, 0.0
  %vm196 = vcmp.gt.f32.partialorder %v178, 0.0
  %vm197 = vcmp.gt.f32.partialorder %v192, 0.0
  %v198 = vmul.f32 %v176, 1.442695
  %v199 = vpow.pop %v198
  %v200 = vmul.f32 %v190, 1.442695
  %v201 = vpow.pop %v200
  %v202 = vmul.f32 %v178, 1.442695
  %v203 = vpow.pop %v202
  %v204 = vmul.f32 %v192, 1.442695
  %v205 = vpow.pop %v204
  %v206 = vsub.f32 %v199, 1.0
  %v207 = vsub.f32 %v201, 1.0
  %v208 = vsub.f32 %v203, 1.0
  %v209 = vsub.f32 %v205, 1.0
  %v210 = vmul.f32 %v206, 1.6732632
  %v211 = vmul.f32 %v207, 1.6732632
  %v212 = vmul.f32 %v208, 1.6732632
  %v213 = vmul.f32 %v209, 1.6732632
  %v214 = vsel %vm194, %v176, %v210
  %v215 = vsel %vm195, %v190, %v211
  %v216 = vsel %vm196, %v178, %v212
  %v217 = vsel %vm197, %v192, %v213
  %v218 = vmul.f32 %v214, 1.050701
  %v219 = vmul.f32 %v215, 1.050701
  %v220 = vmul.f32 %v216, 1.050701
  %v221 = vmul.f32 %v217, 1.050701
  %v222 = vpack.c.bf16 %v220, %v218
  %v223 = vpack.c.bf16 %v221, %v219
  %v224 = vld [vmem:[%s3] sm:$0xff]
  %v225 = vld [vmem:[%s3 + $0x8] sm:$0xf]
  %v226 = vld [vmem:[%s3 + $0xc] sm:$0xff]
  %v227 = vld [vmem:[%s3 + $0x14] sm:$0xf]
  %v228 = vld [vmem:[%s3 + $0x18] sm:$0xff]
  %v229 = vld [vmem:[%s3 + $0x20] sm:$0xf]
  %v230 = vld [vmem:[%s3 + $0x24] sm:$0xff]
  %v231 = vld [vmem:[%s3 + $0x2c] sm:$0xf]
  %v232 = vld [vmem:[%s3 + $0x30] sm:$0xff]
  %v233 = vld [vmem:[%s3 + $0x38] sm:$0xf]
  %v234 = vld [vmem:[%s3 + $0x3c] sm:$0xff]
  %v235 = vld [vmem:[%s3 + $0x44] sm:$0xf]
  %v236 = vld [vmem:[%s3 + $0x48] sm:$0xff]
  %v237 = vld [vmem:[%s3 + $0x50] sm:$0xf]
  %v238 = vld [vmem:[%s3 + $0x54] sm:$0xff]
  %v239 = vld [vmem:[%s3 + $0x5c] sm:$0xf]
  %v240 = vld [vmem:[%s3 + $0x60] sm:$0xff]
  %v241 = vld [vmem:[%s3 + $0x68] sm:$0xf]
  %v242 = vld [vmem:[%s3 + $0x6c] sm:$0xff]
  %v243 = vld [vmem:[%s3 + $0x74] sm:$0xf]
  %v244 = vld [vmem:[%s3 + $0x78] sm:$0xff]
  %v245 = vld [vmem:[%s3 + $0x80] sm:$0xf]
  %v246 = vld [vmem:[%s3 + $0x84] sm:$0xff]
  %v247 = vld [vmem:[%s3 + $0x8c] sm:$0xf]
  %v248 = vld [vmem:[%s3 + $0x90] sm:$0xff]
  %v249 = vld [vmem:[%s3 + $0x98] sm:$0xf]
  %v250 = vld [vmem:[%s3 + $0x9c] sm:$0xff]
  %v251 = vld [vmem:[%s3 + $0xa4] sm:$0xf]
  %v252 = vld [vmem:[%s3 + $0xa8] sm:$0xff]
  %v253 = vld [vmem:[%s3 + $0xb0] sm:$0xf]
  %v254 = vld [vmem:[%s3 + $0xb4] sm:$0xff]
  %v255 = vld [vmem:[%s3 + $0xbc] sm:$0xf]
  %v256 = vld [vmem:[%s3 + $0xc0] sm:$0xff]
  %v257 = vld [vmem:[%s3 + $0xc8] sm:$0xf]
  %v258 = vld [vmem:[%s3 + $0xcc] sm:$0xff]
  %v259 = vld [vmem:[%s3 + $0xd4] sm:$0xf]
  %v260 = vld [vmem:[%s3 + $0xd8] sm:$0xff]
  %v261 = vld [vmem:[%s3 + $0xe0] sm:$0xf]
  %v262 = vld [vmem:[%s3 + $0xe4] sm:$0xff]
  %v263 = vld [vmem:[%s3 + $0xec] sm:$0xf]
  %v264 = vld [vmem:[%s3 + $0xf0] sm:$0xff]
  %v265 = vld [vmem:[%s3 + $0xf8] sm:$0xf]
  %v266 = vld [vmem:[%s3 + $0xfc] sm:$0xff]
  %v267 = vld [vmem:[%s3 + $0x104] sm:$0xf]
  %v268 = vld [vmem:[%s3 + $0x108] sm:$0xff]
  %v269 = vld [vmem:[%s3 + $0x110] sm:$0xf]
  %v270 = vld [vmem:[%s3 + $0x114] sm:$0xff]
  %v271 = vld [vmem:[%s3 + $0x11c] sm:$0xf]
  %v272 = vld [vmem:[%s3 + $0x120] sm:$0xff]
  %v273 = vld [vmem:[%s3 + $0x128] sm:$0xf]
  %v274 = vld [vmem:[%s3 + $0x12c] sm:$0xff]
  %v275 = vld [vmem:[%s3 + $0x134] sm:$0xf]
  %v276 = vld [vmem:[%s3 + $0x138] sm:$0xff]
  %v277 = vld [vmem:[%s3 + $0x140] sm:$0xf]
  %v278 = vld [vmem:[%s3 + $0x144] sm:$0xff]
  %v279 = vld [vmem:[%s3 + $0x14c] sm:$0xf]
  %v280 = vld [vmem:[%s3 + $0x150] sm:$0xff]
  %v281 = vld [vmem:[%s3 + $0x158] sm:$0xf]
  %v282 = vld [vmem:[%s3 + $0x15c] sm:$0xff]
  %v283 = vld [vmem:[%s3 + $0x164] sm:$0xf]
  %v284 = vld [vmem:[%s3 + $0x168] sm:$0xff]
  %v285 = vld [vmem:[%s3 + $0x170] sm:$0xf]
  %v286 = vld [vmem:[%s3 + $0x174] sm:$0xff]
  %v287 = vld [vmem:[%s3 + $0x17c] sm:$0xf]
  %v288 = vld [vmem:[%s4] sm:$0x7]
  %v290 = vperm.slane %v288, 0
  %v291 = vperm.slane %v288, 1
  %v292 = vperm.slane %v288, 2
  %v360 = vunpack.c.l.b16 %v224
  %v361 = vunpack.c.h.b16 %v224
  %v362 = vunpack.c.l.b16 %v225
  %v363 = vunpack.c.l.b16 %v226
  %v364 = vunpack.c.h.b16 %v226
  %v365 = vunpack.c.l.b16 %v227
  %v366 = vunpack.c.l.b16 %v228
  %v367 = vunpack.c.h.b16 %v228
  %v368 = vunpack.c.l.b16 %v229
  %v369 = vunpack.c.l.b16 %v230
  %v370 = vunpack.c.h.b16 %v230
  %v371 = vunpack.c.l.b16 %v231
  %v372 = vunpack.c.l.b16 %v232
  %v373 = vunpack.c.h.b16 %v232
  %v374 = vunpack.c.l.b16 %v233
  %v375 = vunpack.c.l.b16 %v234
  %v376 = vunpack.c.h.b16 %v234
  %v377 = vunpack.c.l.b16 %v235
  %v378 = vunpack.c.l.b16 %v236
  %v379 = vunpack.c.h.b16 %v236
  %v380 = vunpack.c.l.b16 %v237
  %v381 = vunpack.c.l.b16 %v238
  %v382 = vunpack.c.h.b16 %v238
  %v383 = vunpack.c.l.b16 %v239
  %v384 = vunpack.c.l.b16 %v240
  %v385 = vunpack.c.h.b16 %v240
  %v386 = vunpack.c.l.b16 %v241
  %v387 = vunpack.c.l.b16 %v242
  %v388 = vunpack.c.h.b16 %v242
  %v389 = vunpack.c.l.b16 %v243
  %v390 = vunpack.c.l.b16 %v244
  %v391 = vunpack.c.h.b16 %v244
  %v392 = vunpack.c.l.b16 %v245
  %v393 = vunpack.c.l.b16 %v246
  %v394 = vunpack.c.h.b16 %v246
  %v395 = vunpack.c.l.b16 %v247
  %v396 = vunpack.c.l.b16 %v248
  %v397 = vunpack.c.h.b16 %v248
  %v398 = vunpack.c.l.b16 %v249
  %v399 = vunpack.c.l.b16 %v250
  %v400 = vunpack.c.h.b16 %v250
  %v401 = vunpack.c.l.b16 %v251
  %v402 = vunpack.c.l.b16 %v252
  %v403 = vunpack.c.h.b16 %v252
  %v404 = vunpack.c.l.b16 %v253
  %v405 = vunpack.c.l.b16 %v254
  %v406 = vunpack.c.h.b16 %v254
  %v407 = vunpack.c.l.b16 %v255
  %v408 = vunpack.c.l.b16 %v256
  %v409 = vunpack.c.h.b16 %v256
  %v410 = vunpack.c.l.b16 %v257
  %v411 = vunpack.c.l.b16 %v258
  %v412 = vunpack.c.h.b16 %v258
  %v413 = vunpack.c.l.b16 %v259
  %v414 = vunpack.c.l.b16 %v260
  %v415 = vunpack.c.h.b16 %v260
  %v416 = vunpack.c.l.b16 %v261
  %v417 = vunpack.c.l.b16 %v262
  %v418 = vunpack.c.h.b16 %v262
  %v419 = vunpack.c.l.b16 %v263
  %v420 = vunpack.c.l.b16 %v264
  %v421 = vunpack.c.h.b16 %v264
  %v422 = vunpack.c.l.b16 %v265
  %v423 = vunpack.c.l.b16 %v266
  %v424 = vunpack.c.h.b16 %v266
  %v425 = vunpack.c.l.b16 %v267
  %v426 = vunpack.c.l.b16 %v268
  %v427 = vunpack.c.h.b16 %v268
  %v428 = vunpack.c.l.b16 %v269
  %v429 = vunpack.c.l.b16 %v270
  %v430 = vunpack.c.h.b16 %v270
  %v431 = vunpack.c.l.b16 %v271
  %v432 = vunpack.c.l.b16 %v272
  %v433 = vunpack.c.h.b16 %v272
  %v434 = vunpack.c.l.b16 %v273
  %v435 = vunpack.c.l.b16 %v274
  %v436 = vunpack.c.h.b16 %v274
  %v437 = vunpack.c.l.b16 %v275
  %v438 = vunpack.c.l.b16 %v276
  %v439 = vunpack.c.h.b16 %v276
  %v440 = vunpack.c.l.b16 %v277
  %v441 = vunpack.c.l.b16 %v278
  %v442 = vunpack.c.h.b16 %v278
  %v443 = vunpack.c.l.b16 %v279
  %v444 = vunpack.c.l.b16 %v280
  %v445 = vunpack.c.h.b16 %v280
  %v446 = vunpack.c.l.b16 %v281
  %v447 = vunpack.c.l.b16 %v282
  %v448 = vunpack.c.h.b16 %v282
  %v449 = vunpack.c.l.b16 %v283
  %v450 = vunpack.c.l.b16 %v284
  %v451 = vunpack.c.h.b16 %v284
  %v452 = vunpack.c.l.b16 %v285
  %v453 = vunpack.c.l.b16 %v286
  %v454 = vunpack.c.h.b16 %v286
  %v455 = vunpack.c.l.b16 %v287
  %v456 = vpack.c.b16 %v363, %v360
  %v457 = vpack.c.b16 %v364, %v361
  %v458 = vpack.c.b16 %v365, %v362
  %v459 = vpack.c.b16 %v369, %v366
  %v460 = vpack.c.b16 %v370, %v367
  %v461 = vpack.c.b16 %v371, %v368
  %v462 = vpack.c.b16 %v375, %v372
  %v463 = vpack.c.b16 %v376, %v373
  %v464 = vpack.c.b16 %v377, %v374
  %v465 = vpack.c.b16 %v381, %v378
  %v466 = vpack.c.b16 %v382, %v379
  %v467 = vpack.c.b16 %v383, %v380
  %v468 = vpack.c.b16 %v387, %v384
  %v469 = vpack.c.b16 %v388, %v385
  %v470 = vpack.c.b16 %v389, %v386
  %v471 = vpack.c.b16 %v393, %v390
  %v472 = vpack.c.b16 %v394, %v391
  %v473 = vpack.c.b16 %v395, %v392
  %v474 = vpack.c.b16 %v399, %v396
  %v475 = vpack.c.b16 %v400, %v397
  %v476 = vpack.c.b16 %v401, %v398
  %v477 = vpack.c.b16 %v405, %v402
  %v478 = vpack.c.b16 %v406, %v403
  %v479 = vpack.c.b16 %v407, %v404
  %v480 = vpack.c.b16 %v411, %v408
  %v481 = vpack.c.b16 %v412, %v409
  %v482 = vpack.c.b16 %v413, %v410
  %v483 = vpack.c.b16 %v417, %v414
  %v484 = vpack.c.b16 %v418, %v415
  %v485 = vpack.c.b16 %v419, %v416
  %v486 = vpack.c.b16 %v423, %v420
  %v487 = vpack.c.b16 %v424, %v421
  %v488 = vpack.c.b16 %v425, %v422
  %v489 = vpack.c.b16 %v429, %v426
  %v490 = vpack.c.b16 %v430, %v427
  %v491 = vpack.c.b16 %v431, %v428
  %v492 = vpack.c.b16 %v435, %v432
  %v493 = vpack.c.b16 %v436, %v433
  %v494 = vpack.c.b16 %v437, %v434
  %v495 = vpack.c.b16 %v441, %v438
  %v496 = vpack.c.b16 %v442, %v439
  %v497 = vpack.c.b16 %v443, %v440
  %v498 = vpack.c.b16 %v447, %v444
  %v499 = vpack.c.b16 %v448, %v445
  %v500 = vpack.c.b16 %v449, %v446
  %v501 = vpack.c.b16 %v453, %v450
  %v502 = vpack.c.b16 %v454, %v451
  %v503 = vpack.c.b16 %v455, %v452
  %552 = vmatpush.bf16.msra.mxu0 %v477
  %553 = vmatpush.bf16.msra.mxu0 %v474
  %554 = vmatpush.bf16.msra.mxu0 %v471
  %555 = vmatpush.bf16.msra.mxu0 %v468
  %556 = vmatpush.bf16.msra.mxu0 %v465
  %557 = vmatpush.bf16.msra.mxu0 %v462
  %558 = vmatpush.bf16.msra.mxu0 %v459
  %559 = vmatpush.bf16.msra.mxu0 %v456
  %560 = vmatmul.bf16.gmra.mxu0 %v222
  %v561 = vpop.f32.mrf.mxu0
  %v562 = vadd.f32 %v290, %v561
  %v563 = vpop.f32.mrf.mxu0
  %v564 = vadd.f32 %v290, %v563
  %565 = vdwg.mxu0
  %566 = vmatpush.bf16.msra.mxu0 %v501
  %567 = vmatpush.bf16.msra.mxu0 %v498
  %568 = vmatpush.bf16.msra.mxu0 %v495
  %569 = vmatpush.bf16.msra.mxu0 %v492
  %570 = vmatpush.bf16.msra.mxu0 %v489
  %571 = vmatpush.bf16.msra.mxu0 %v486
  %572 = vmatpush.bf16.msra.mxu0 %v483
  %573 = vmatpush.bf16.msra.mxu0 %v480
  %574 = vmatmul.bf16.gmra.mxu0 %v223
  %v575 = vpop.f32.mrf.mxu0
  %v576 = vadd.f32 %v562, %v575
  %v577 = vpop.f32.mrf.mxu0
  %v578 = vadd.f32 %v564, %v577
  %579 = vdwg.mxu0
  %580 = vmatpush.bf16.msra.mxu0 %v478
  %581 = vmatpush.bf16.msra.mxu0 %v475
  %582 = vmatpush.bf16.msra.mxu0 %v472
  %583 = vmatpush.bf16.msra.mxu0 %v469
  %584 = vmatpush.bf16.msra.mxu0 %v466
  %585 = vmatpush.bf16.msra.mxu0 %v463
  %586 = vmatpush.bf16.msra.mxu0 %v460
  %587 = vmatpush.bf16.msra.mxu0 %v457
  %588 = vmatmul.bf16.gmra.mxu0 %v222
  %v589 = vpop.f32.mrf.mxu0
  %v590 = vadd.f32 %v291, %v589
  %v591 = vpop.f32.mrf.mxu0
  %v592 = vadd.f32 %v291, %v591
  %593 = vdwg.mxu0
  %594 = vmatpush.bf16.msra.mxu0 %v502
  %595 = vmatpush.bf16.msra.mxu0 %v499
  %596 = vmatpush.bf16.msra.mxu0 %v496
  %597 = vmatpush.bf16.msra.mxu0 %v493
  %598 = vmatpush.bf16.msra.mxu0 %v490
  %599 = vmatpush.bf16.msra.mxu0 %v487
  %600 = vmatpush.bf16.msra.mxu0 %v484
  %601 = vmatpush.bf16.msra.mxu0 %v481
  %602 = vmatmul.bf16.gmra.mxu0 %v223
  %v603 = vpop.f32.mrf.mxu0
  %v604 = vadd.f32 %v590, %v603
  %v605 = vpop.f32.mrf.mxu0
  %v606 = vadd.f32 %v592, %v605
  %607 = vdwg.mxu0
  %608 = vmatpush.bf16.msra.mxu0 %v479
  %609 = vmatpush.bf16.msra.mxu0 %v476
  %610 = vmatpush.bf16.msra.mxu0 %v473
  %611 = vmatpush.bf16.msra.mxu0 %v470
  %612 = vmatpush.bf16.msra.mxu0 %v467
  %613 = vmatpush.bf16.msra.mxu0 %v464
  %614 = vmatpush.bf16.msra.mxu0 %v461
  %615 = vmatpush.bf16.msra.mxu0 %v458
  %616 = vmatmul.bf16.gmra.mxu0 %v222
  %v617 = vpop.f32.mrf.mxu0
  %v618 = vadd.f32 %v292, %v617
  %v619 = vpop.f32.mrf.mxu0
  %v620 = vadd.f32 %v292, %v619
  %621 = vdwg.mxu0
  %622 = vmatpush.bf16.msra.mxu0 %v503
  %623 = vmatpush.bf16.msra.mxu0 %v500
  %624 = vmatpush.bf16.msra.mxu0 %v497
  %625 = vmatpush.bf16.msra.mxu0 %v494
  %626 = vmatpush.bf16.msra.mxu0 %v491
  %627 = vmatpush.bf16.msra.mxu0 %v488
  %628 = vmatpush.bf16.msra.mxu0 %v485
  %629 = vmatpush.bf16.msra.mxu0 %v482
  %630 = vmatmul.bf16.gmra.mxu0 %v223
  %v631 = vpop.f32.mrf.mxu0
  %v632 = vadd.f32 %v618, %v631
  %v633 = vpop.f32.mrf.mxu0
  %v634 = vadd.f32 %v620, %v633
  %635 = vdwg.mxu0
  %vm636 = vcmp.gt.f32.partialorder %v576, 0.0
  %vm637 = vcmp.gt.f32.partialorder %v604, 0.0
  %vm638 = vcmp.gt.f32.partialorder %v578, 0.0
  %vm639 = vcmp.gt.f32.partialorder %v606, 0.0
  %v640 = vmul.f32 %v576, 1.442695
  %v641 = vpow.pop %v640
  %v642 = vmul.f32 %v604, 1.442695
  %v643 = vpow.pop %v642
  %v644 = vmul.f32 %v578, 1.442695
  %v645 = vpow.pop %v644
  %v646 = vmul.f32 %v606, 1.442695
  %v647 = vpow.pop %v646
  %v648 = vsub.f32 %v641, 1.0
  %v649 = vsub.f32 %v643, 1.0
  %v650 = vsub.f32 %v645, 1.0
  %v651 = vsub.f32 %v647, 1.0
  %v652 = vmul.f32 %v648, 1.6732632
  %v653 = vmul.f32 %v649, 1.6732632
  %v654 = vmul.f32 %v650, 1.6732632
  %v655 = vmul.f32 %v651, 1.6732632
  %v656 = vsel %vm636, %v576, %v652
  %v657 = vsel %vm637, %v604, %v653
  %v658 = vsel %vm638, %v578, %v654
  %v659 = vsel %vm639, %v606, %v655
  %v660 = vmul.f32 %v656, 1.050701
  %v661 = vmul.f32 %v657, 1.050701
  %v662 = vmul.f32 %v658, 1.050701
  %v663 = vmul.f32 %v659, 1.050701
  %v664 = vpack.c.bf16 %v662, %v660
  %v665 = vpack.c.bf16 %v663, %v661
  %v666 = vld [vmem:[%s5] sm:$0xff]
  %v667 = vld [vmem:[%s5 + $0x8] sm:$0xff]
  %v668 = vld [vmem:[%s5 + $0x10] sm:$0xff]
  %v669 = vld [vmem:[%s5 + $0x18] sm:$0xff]
  %v670 = vld [vmem:[%s5 + $0x20] sm:$0xff]
  %v671 = vld [vmem:[%s5 + $0x28] sm:$0xff]
  %v672 = vld [vmem:[%s5 + $0x30] sm:$0xff]
  %v673 = vld [vmem:[%s5 + $0x38] sm:$0xff]
  %v674 = vld [vmem:[%s5 + $0x40] sm:$0xff]
  %v675 = vld [vmem:[%s5 + $0x48] sm:$0xff]
  %v676 = vld [vmem:[%s5 + $0x50] sm:$0xff]
  %v677 = vld [vmem:[%s5 + $0x58] sm:$0xff]
  %v678 = vld [vmem:[%s5 + $0x60] sm:$0xff]
  %v679 = vld [vmem:[%s5 + $0x68] sm:$0xff]
  %v680 = vld [vmem:[%s5 + $0x70] sm:$0xff]
  %v681 = vld [vmem:[%s5 + $0x78] sm:$0xff]
  %v682 = vld [vmem:[%s5 + $0x80] sm:$0xff]
  %v683 = vld [vmem:[%s5 + $0x88] sm:$0xff]
  %v684 = vld [vmem:[%s5 + $0x90] sm:$0xff]
  %v685 = vld [vmem:[%s5 + $0x98] sm:$0xff]
  %v686 = vld [vmem:[%s5 + $0xa0] sm:$0xff]
  %v687 = vld [vmem:[%s5 + $0xa8] sm:$0xff]
  %v688 = vld [vmem:[%s5 + $0xb0] sm:$0xff]
  %v689 = vld [vmem:[%s5 + $0xb8] sm:$0xff]
  %v690 = vld [vmem:[%s5 + $0xc0] sm:$0xff]
  %v691 = vld [vmem:[%s5 + $0xc8] sm:$0xff]
  %v692 = vld [vmem:[%s5 + $0xd0] sm:$0xff]
  %v693 = vld [vmem:[%s5 + $0xd8] sm:$0xff]
  %v694 = vld [vmem:[%s5 + $0xe0] sm:$0xff]
  %v695 = vld [vmem:[%s5 + $0xe8] sm:$0xff]
  %v696 = vld [vmem:[%s5 + $0xf0] sm:$0xff]
  %v697 = vld [vmem:[%s5 + $0xf8] sm:$0xff]
  %v698 = vld [vmem:[%s6] sm:$0x3]
  %v700 = vperm.slane %v698, 0
  %v701 = vperm.slane %v698, 1
  %v736 = vunpack.c.l.b16 %v666
  %v737 = vunpack.c.h.b16 %v666
  %v738 = vunpack.c.l.b16 %v667
  %v739 = vunpack.c.h.b16 %v667
  %v740 = vunpack.c.l.b16 %v668
  %v741 = vunpack.c.h.b16 %v668
  %v742 = vunpack.c.l.b16 %v669
  %v743 = vunpack.c.h.b16 %v669
  %v744 = vunpack.c.l.b16 %v670
  %v745 = vunpack.c.h.b16 %v670
  %v746 = vunpack.c.l.b16 %v671
  %v747 = vunpack.c.h.b16 %v671
  %v748 = vunpack.c.l.b16 %v672
  %v749 = vunpack.c.h.b16 %v672
  %v750 = vunpack.c.l.b16 %v673
  %v751 = vunpack.c.h.b16 %v673
  %v752 = vunpack.c.l.b16 %v674
  %v753 = vunpack.c.h.b16 %v674
  %v754 = vunpack.c.l.b16 %v675
  %v755 = vunpack.c.h.b16 %v675
  %v756 = vunpack.c.l.b16 %v676
  %v757 = vunpack.c.h.b16 %v676
  %v758 = vunpack.c.l.b16 %v677
  %v759 = vunpack.c.h.b16 %v677
  %v760 = vunpack.c.l.b16 %v678
  %v761 = vunpack.c.h.b16 %v678
  %v762 = vunpack.c.l.b16 %v679
  %v763 = vunpack.c.h.b16 %v679
  %v764 = vunpack.c.l.b16 %v680
  %v765 = vunpack.c.h.b16 %v680
  %v766 = vunpack.c.l.b16 %v681
  %v767 = vunpack.c.h.b16 %v681
  %v768 = vunpack.c.l.b16 %v682
  %v769 = vunpack.c.h.b16 %v682
  %v770 = vunpack.c.l.b16 %v683
  %v771 = vunpack.c.h.b16 %v683
  %v772 = vunpack.c.l.b16 %v684
  %v773 = vunpack.c.h.b16 %v684
  %v774 = vunpack.c.l.b16 %v685
  %v775 = vunpack.c.h.b16 %v685
  %v776 = vunpack.c.l.b16 %v686
  %v777 = vunpack.c.h.b16 %v686
  %v778 = vunpack.c.l.b16 %v687
  %v779 = vunpack.c.h.b16 %v687
  %v780 = vunpack.c.l.b16 %v688
  %v781 = vunpack.c.h.b16 %v688
  %v782 = vunpack.c.l.b16 %v689
  %v783 = vunpack.c.h.b16 %v689
  %v784 = vunpack.c.l.b16 %v690
  %v785 = vunpack.c.h.b16 %v690
  %v786 = vunpack.c.l.b16 %v691
  %v787 = vunpack.c.h.b16 %v691
  %v788 = vunpack.c.l.b16 %v692
  %v789 = vunpack.c.h.b16 %v692
  %v790 = vunpack.c.l.b16 %v693
  %v791 = vunpack.c.h.b16 %v693
  %v792 = vunpack.c.l.b16 %v694
  %v793 = vunpack.c.h.b16 %v694
  %v794 = vunpack.c.l.b16 %v695
  %v795 = vunpack.c.h.b16 %v695
  %v796 = vunpack.c.l.b16 %v696
  %v797 = vunpack.c.h.b16 %v696
  %v798 = vunpack.c.l.b16 %v697
  %v799 = vunpack.c.h.b16 %v697
  %v800 = vpack.c.b16 %v738, %v736
  %v801 = vpack.c.b16 %v739, %v737
  %v802 = vpack.c.b16 %v742, %v740
  %v803 = vpack.c.b16 %v743, %v741
  %v804 = vpack.c.b16 %v746, %v744
  %v805 = vpack.c.b16 %v747, %v745
  %v806 = vpack.c.b16 %v750, %v748
  %v807 = vpack.c.b16 %v751, %v749
  %v808 = vpack.c.b16 %v754, %v752
  %v809 = vpack.c.b16 %v755, %v753
  %v810 = vpack.c.b16 %v758, %v756
  %v811 = vpack.c.b16 %v759, %v757
  %v812 = vpack.c.b16 %v762, %v760
  %v813 = vpack.c.b16 %v763, %v761
  %v814 = vpack.c.b16 %v766, %v764
  %v815 = vpack.c.b16 %v767, %v765
  %v816 = vpack.c.b16 %v770, %v768
  %v817 = vpack.c.b16 %v771, %v769
  %v818 = vpack.c.b16 %v774, %v772
  %v819 = vpack.c.b16 %v775, %v773
  %v820 = vpack.c.b16 %v778, %v776
  %v821 = vpack.c.b16 %v779, %v777
  %v822 = vpack.c.b16 %v782, %v780
  %v823 = vpack.c.b16 %v783, %v781
  %v824 = vpack.c.b16 %v786, %v784
  %v825 = vpack.c.b16 %v787, %v785
  %v826 = vpack.c.b16 %v790, %v788
  %v827 = vpack.c.b16 %v791, %v789
  %v828 = vpack.c.b16 %v794, %v792
  %v829 = vpack.c.b16 %v795, %v793
  %v830 = vpack.c.b16 %v798, %v796
  %v831 = vpack.c.b16 %v799, %v797
  %864 = vmatpush.bf16.msra.mxu0 %v814
  %865 = vmatpush.bf16.msra.mxu0 %v812
  %866 = vmatpush.bf16.msra.mxu0 %v810
  %867 = vmatpush.bf16.msra.mxu0 %v808
  %868 = vmatpush.bf16.msra.mxu0 %v806
  %869 = vmatpush.bf16.msra.mxu0 %v804
  %870 = vmatpush.bf16.msra.mxu0 %v802
  %871 = vmatpush.bf16.msra.mxu0 %v800
  %872 = vmatmul.bf16.gmra.mxu0 %v664
  %v873 = vpop.f32.mrf.mxu0
  %v874 = vadd.f32 %v700, %v873
  %v875 = vpop.f32.mrf.mxu0
  %v876 = vadd.f32 %v700, %v875
  %877 = vdwg.mxu0
  %878 = vmatpush.bf16.msra.mxu0 %v830
  %879 = vmatpush.bf16.msra.mxu0 %v828
  %880 = vmatpush.bf16.msra.mxu0 %v826
  %881 = vmatpush.bf16.msra.mxu0 %v824
  %882 = vmatpush.bf16.msra.mxu0 %v822
  %883 = vmatpush.bf16.msra.mxu0 %v820
  %884 = vmatpush.bf16.msra.mxu0 %v818
  %885 = vmatpush.bf16.msra.mxu0 %v816
  %886 = vmatmul.bf16.gmra.mxu0 %v665
  %v887 = vpop.f32.mrf.mxu0
  %v888 = vadd.f32 %v874, %v887
  %v889 = vpop.f32.mrf.mxu0
  %v890 = vadd.f32 %v876, %v889
  %891 = vdwg.mxu0
  %892 = vmatpush.bf16.msra.mxu0 %v815
  %893 = vmatpush.bf16.msra.mxu0 %v813
  %894 = vmatpush.bf16.msra.mxu0 %v811
  %895 = vmatpush.bf16.msra.mxu0 %v809
  %896 = vmatpush.bf16.msra.mxu0 %v807
  %897 = vmatpush.bf16.msra.mxu0 %v805
  %898 = vmatpush.bf16.msra.mxu0 %v803
  %899 = vmatpush.bf16.msra.mxu0 %v801
  %900 = vmatmul.bf16.gmra.mxu0 %v664
  %v901 = vpop.f32.mrf.mxu0
  %v902 = vadd.f32 %v701, %v901
  %v903 = vpop.f32.mrf.mxu0
  %v904 = vadd.f32 %v701, %v903
  %905 = vdwg.mxu0
  %906 = vmatpush.bf16.msra.mxu0 %v831
  %907 = vmatpush.bf16.msra.mxu0 %v829
  %908 = vmatpush.bf16.msra.mxu0 %v827
  %909 = vmatpush.bf16.msra.mxu0 %v825
  %910 = vmatpush.bf16.msra.mxu0 %v823
  %911 = vmatpush.bf16.msra.mxu0 %v821
  %912 = vmatpush.bf16.msra.mxu0 %v819
  %913 = vmatpush.bf16.msra.mxu0 %v817
  %914 = vmatmul.bf16.gmra.mxu0 %v665
  %v915 = vpop.f32.mrf.mxu0
  %v916 = vadd.f32 %v902, %v915
  %v917 = vpop.f32.mrf.mxu0
  %v918 = vadd.f32 %v904, %v917
  %919 = vdwg.mxu0
  %v920 = vadd.f32 %v632, %v916
  %v921 = vadd.f32 %v634, %v918
  %v922 = vmax.f32 %v920, 0.0
  %v923 = vmax.f32 %v921, 0.0
  %v924 = vpack.c.bf16 %v923, %v922
  %v925 = vld [vmem:[%s7] sm:$0xf]
  %v926 = vld [vmem:[%s7 + $0x4] sm:$0xf]
  %v927 = vld [vmem:[%s7 + $0x8] sm:$0xf]
  %v928 = vld [vmem:[%s7 + $0xc] sm:$0xf]
  %v929 = vld [vmem:[%s7 + $0x10] sm:$0xf]
  %v930 = vld [vmem:[%s7 + $0x14] sm:$0xf]
  %v931 = vld [vmem:[%s7 + $0x18] sm:$0xf]
  %v932 = vld [vmem:[%s7 + $0x1c] sm:$0xf]
  %v933 = vld [vmem:[%s7 + $0x20] sm:$0xf]
  %v934 = vld [vmem:[%s7 + $0x24] sm:$0xf]
  %v935 = vld [vmem:[%s7 + $0x28] sm:$0xf]
  %v936 = vld [vmem:[%s7 + $0x2c] sm:$0xf]
  %v937 = vld [vmem:[%s7 + $0x30] sm:$0xf]
  %v938 = vld [vmem:[%s7 + $0x34] sm:$0xf]
  %v939 = vld [vmem:[%s7 + $0x38] sm:$0xf]
  %v940 = vld [vmem:[%s7 + $0x3c] sm:$0xf]
  %v941 = vld [vmem:[%s8] sm:$0x1]
  %v943 = vperm.slane %v941, 0
  %v961 = vunpack.c.l.b16 %v925
  %v962 = vunpack.c.l.b16 %v926
  %v963 = vunpack.c.l.b16 %v927
  %v964 = vunpack.c.l.b16 %v928
  %v965 = vunpack.c.l.b16 %v929
  %v966 = vunpack.c.l.b16 %v930
  %v967 = vunpack.c.l.b16 %v931
  %v968 = vunpack.c.l.b16 %v932
  %v969 = vunpack.c.l.b16 %v933
  %v970 = vunpack.c.l.b16 %v934
  %v971 = vunpack.c.l.b16 %v935
  %v972 = vunpack.c.l.b16 %v936
  %v973 = vunpack.c.l.b16 %v937
  %v974 = vunpack.c.l.b16 %v938
  %v975 = vunpack.c.l.b16 %v939
  %v976 = vunpack.c.l.b16 %v940
  %v977 = vpack.c.b16 %v962, %v961
  %v978 = vpack.c.b16 %v964, %v963
  %v979 = vpack.c.b16 %v966, %v965
  %v980 = vpack.c.b16 %v968, %v967
  %v981 = vpack.c.b16 %v970, %v969
  %v982 = vpack.c.b16 %v972, %v971
  %v983 = vpack.c.b16 %v974, %v973
  %v984 = vpack.c.b16 %v976, %v975
  %993 = vmatpush.bf16.msra.mxu0 %v984
  %994 = vmatpush.bf16.msra.mxu0 %v983
  %995 = vmatpush.bf16.msra.mxu0 %v982
  %996 = vmatpush.bf16.msra.mxu0 %v981
  %997 = vmatpush.bf16.msra.mxu0 %v980
  %998 = vmatpush.bf16.msra.mxu0 %v979
  %999 = vmatpush.bf16.msra.mxu0 %v978
  %1000 = vmatpush.bf16.msra.mxu0 %v977
  %1001 = vmatmul.bf16.gmra.mxu0 %v924
  %v1002 = vpop.f32.mrf.mxu0
  %v1003 = vadd.f32 %v943, %v1002
  %v1004 = vpop.f32.mrf.mxu0
  %v1005 = vadd.f32 %v943, %v1004
  %1006 = vdwg.mxu0
  %v1007 = vmax.f32 %v1003, 0.0
  %v1008 = vmax.f32 %v1005, 0.0
  %v1009 = vpack.c.bf16 %v1008, %v1007
  %v1010 = vld [vmem:[%s9] sm:$0xff]
  %v1011 = vld [vmem:[%s9 + $0x8] sm:$0xf]
  %v1012 = vld [vmem:[%s9 + $0xc] sm:$0xff]
  %v1013 = vld [vmem:[%s9 + $0x14] sm:$0xf]
  %v1014 = vld [vmem:[%s9 + $0x18] sm:$0xff]
  %v1015 = vld [vmem:[%s9 + $0x20] sm:$0xf]
  %v1016 = vld [vmem:[%s9 + $0x24] sm:$0xff]
  %v1017 = vld [vmem:[%s9 + $0x2c] sm:$0xf]
  %v1018 = vld [vmem:[%s9 + $0x30] sm:$0xff]
  %v1019 = vld [vmem:[%s9 + $0x38] sm:$0xf]
  %v1020 = vld [vmem:[%s9 + $0x3c] sm:$0xff]
  %v1021 = vld [vmem:[%s9 + $0x44] sm:$0xf]
  %v1022 = vld [vmem:[%s9 + $0x48] sm:$0xff]
  %v1023 = vld [vmem:[%s9 + $0x50] sm:$0xf]
  %v1024 = vld [vmem:[%s9 + $0x54] sm:$0xff]
  %v1025 = vld [vmem:[%s9 + $0x5c] sm:$0xf]
  %v1026 = vld [vmem:[%s9 + $0x60] sm:$0xff]
  %v1027 = vld [vmem:[%s9 + $0x68] sm:$0xf]
  %v1028 = vld [vmem:[%s9 + $0x6c] sm:$0xff]
  %v1029 = vld [vmem:[%s9 + $0x74] sm:$0xf]
  %v1030 = vld [vmem:[%s9 + $0x78] sm:$0xff]
  %v1031 = vld [vmem:[%s9 + $0x80] sm:$0xf]
  %v1032 = vld [vmem:[%s9 + $0x84] sm:$0xff]
  %v1033 = vld [vmem:[%s9 + $0x8c] sm:$0xf]
  %v1034 = vld [vmem:[%s9 + $0x90] sm:$0xff]
  %v1035 = vld [vmem:[%s9 + $0x98] sm:$0xf]
  %v1036 = vld [vmem:[%s9 + $0x9c] sm:$0xff]
  %v1037 = vld [vmem:[%s9 + $0xa4] sm:$0xf]
  %v1038 = vld [vmem:[%s9 + $0xa8] sm:$0xff]
  %v1039 = vld [vmem:[%s9 + $0xb0] sm:$0xf]
  %v1040 = vld [vmem:[%s9 + $0xb4] sm:$0xff]
  %v1041 = vld [vmem:[%s9 + $0xbc] sm:$0xf]
  %v1042 = vld [vmem:[%s10] sm:$0x7]
  %v1044 = vperm.slane %v1042, 0
  %v1045 = vperm.slane %v1042, 1
  %v1046 = vperm.slane %v1042, 2
  %v1082 = vunpack.c.l.b16 %v1010
  %v1083 = vunpack.c.h.b16 %v1010
  %v1084 = vunpack.c.l.b16 %v1011
  %v1085 = vunpack.c.l.b16 %v1012
  %v1086 = vunpack.c.h.b16 %v1012
  %v1087 = vunpack.c.l.b16 %v1013
  %v1088 = vunpack.c.l.b16 %v1014
  %v1089 = vunpack.c.h.b16 %v1014
  %v1090 = vunpack.c.l.b16 %v1015
  %v1091 = vunpack.c.l.b16 %v1016
  %v1092 = vunpack.c.h.b16 %v1016
  %v1093 = vunpack.c.l.b16 %v1017
  %v1094 = vunpack.c.l.b16 %v1018
  %v1095 = vunpack.c.h.b16 %v1018
  %v1096 = vunpack.c.l.b16 %v1019
  %v1097 = vunpack.c.l.b16 %v1020
  %v1098 = vunpack.c.h.b16 %v1020
  %v1099 = vunpack.c.l.b16 %v1021
  %v1100 = vunpack.c.l.b16 %v1022
  %v1101 = vunpack.c.h.b16 %v1022
  %v1102 = vunpack.c.l.b16 %v1023
  %v1103 = vunpack.c.l.b16 %v1024
  %v1104 = vunpack.c.h.b16 %v1024
  %v1105 = vunpack.c.l.b16 %v1025
  %v1106 = vunpack.c.l.b16 %v1026
  %v1107 = vunpack.c.h.b16 %v1026
  %v1108 = vunpack.c.l.b16 %v1027
  %v1109 = vunpack.c.l.b16 %v1028
  %v1110 = vunpack.c.h.b16 %v1028
  %v1111 = vunpack.c.l.b16 %v1029
  %v1112 = vunpack.c.l.b16 %v1030
  %v1113 = vunpack.c.h.b16 %v1030
  %v1114 = vunpack.c.l.b16 %v1031
  %v1115 = vunpack.c.l.b16 %v1032
  %v1116 = vunpack.c.h.b16 %v1032
  %v1117 = vunpack.c.l.b16 %v1033
  %v1118 = vunpack.c.l.b16 %v1034
  %v1119 = vunpack.c.h.b16 %v1034
  %v1120 = vunpack.c.l.b16 %v1035
  %v1121 = vunpack.c.l.b16 %v1036
  %v1122 = vunpack.c.h.b16 %v1036
  %v1123 = vunpack.c.l.b16 %v1037
  %v1124 = vunpack.c.l.b16 %v1038
  %v1125 = vunpack.c.h.b16 %v1038
  %v1126 = vunpack.c.l.b16 %v1039
  %v1127 = vunpack.c.l.b16 %v1040
  %v1128 = vunpack.c.h.b16 %v1040
  %v1129 = vunpack.c.l.b16 %v1041
  %v1130 = vpack.c.b16 %v1085, %v1082
  %v1131 = vpack.c.b16 %v1086, %v1083
  %v1132 = vpack.c.b16 %v1087, %v1084
  %v1133 = vpack.c.b16 %v1091, %v1088
  %v1134 = vpack.c.b16 %v1092, %v1089
  %v1135 = vpack.c.b16 %v1093, %v1090
  %v1136 = vpack.c.b16 %v1097, %v1094
  %v1137 = vpack.c.b16 %v1098, %v1095
  %v1138 = vpack.c.b16 %v1099, %v1096
  %v1139 = vpack.c.b16 %v1103, %v1100
  %v1140 = vpack.c.b16 %v1104, %v1101
  %v1141 = vpack.c.b16 %v1105, %v1102
  %v1142 = vpack.c.b16 %v1109, %v1106
  %v1143 = vpack.c.b16 %v1110, %v1107
  %v1144 = vpack.c.b16 %v1111, %v1108
  %v1145 = vpack.c.b16 %v1115, %v1112
  %v1146 = vpack.c.b16 %v1116, %v1113
  %v1147 = vpack.c.b16 %v1117, %v1114
  %v1148 = vpack.c.b16 %v1121, %v1118
  %v1149 = vpack.c.b16 %v1122, %v1119
  %v1150 = vpack.c.b16 %v1123, %v1120
  %v1151 = vpack.c.b16 %v1127, %v1124
  %v1152 = vpack.c.b16 %v1128, %v1125
  %v1153 = vpack.c.b16 %v1129, %v1126
  %1178 = vmatpush.bf16.msra.mxu0 %v1151
  %1179 = vmatpush.bf16.msra.mxu0 %v1148
  %1180 = vmatpush.bf16.msra.mxu0 %v1145
  %1181 = vmatpush.bf16.msra.mxu0 %v1142
  %1182 = vmatpush.bf16.msra.mxu0 %v1139
  %1183 = vmatpush.bf16.msra.mxu0 %v1136
  %1184 = vmatpush.bf16.msra.mxu0 %v1133
  %1185 = vmatpush.bf16.msra.mxu0 %v1130
  %1186 = vmatmul.bf16.gmra.mxu0 %v1009
  %v1187 = vpop.f32.mrf.mxu0
  %v1188 = vadd.f32 %v1044, %v1187
  %v1189 = vpop.f32.mrf.mxu0
  %v1190 = vadd.f32 %v1044, %v1189
  %1191 = vdwg.mxu0
  %1192 = vmatpush.bf16.msra.mxu0 %v1152
  %1193 = vmatpush.bf16.msra.mxu0 %v1149
  %1194 = vmatpush.bf16.msra.mxu0 %v1146
  %1195 = vmatpush.bf16.msra.mxu0 %v1143
  %1196 = vmatpush.bf16.msra.mxu0 %v1140
  %1197 = vmatpush.bf16.msra.mxu0 %v1137
  %1198 = vmatpush.bf16.msra.mxu0 %v1134
  %1199 = vmatpush.bf16.msra.mxu0 %v1131
  %1200 = vmatmul.bf16.gmra.mxu0 %v1009
  %v1201 = vpop.f32.mrf.mxu0
  %v1202 = vadd.f32 %v1045, %v1201
  %v1203 = vpop.f32.mrf.mxu0
  %v1204 = vadd.f32 %v1045, %v1203
  %1205 = vdwg.mxu0
  %1206 = vmatpush.bf16.msra.mxu0 %v1153
  %1207 = vmatpush.bf16.msra.mxu0 %v1150
  %1208 = vmatpush.bf16.msra.mxu0 %v1147
  %1209 = vmatpush.bf16.msra.mxu0 %v1144
  %1210 = vmatpush.bf16.msra.mxu0 %v1141
  %1211 = vmatpush.bf16.msra.mxu0 %v1138
  %1212 = vmatpush.bf16.msra.mxu0 %v1135
  %1213 = vmatpush.bf16.msra.mxu0 %v1132
  %1214 = vmatmul.bf16.gmra.mxu0 %v1009
  %v1215 = vpop.f32.mrf.mxu0
  %v1216 = vadd.f32 %v1046, %v1215
  %v1217 = vpop.f32.mrf.mxu0
  %v1218 = vadd.f32 %v1046, %v1217
  %1219 = vdwg.mxu0
  %v1220 = vmax.f32 %v1188, 0.0
  %v1221 = vmax.f32 %v1202, 0.0
  %v1222 = vmax.f32 %v1216, 0.0
  %v1223 = vmax.f32 %v1190, 0.0
  %v1224 = vmax.f32 %v1204, 0.0
  %v1225 = vmax.f32 %v1218, 0.0
  %v1226 = vpack.c.bf16 %v1223, %v1220
  %v1227 = vpack.c.bf16 %v1224, %v1221
  %v1228 = vpack.c.bf16 %v1225, %v1222
  %v1229 = vld [vmem:[%s11] sm:$0xff]
  %v1230 = vld [vmem:[%s11 + $0x8] sm:$0xff]
  %v1231 = vld [vmem:[%s11 + $0x10] sm:$0xff]
  %v1232 = vld [vmem:[%s11 + $0x18] sm:$0xff]
  %v1233 = vld [vmem:[%s11 + $0x20] sm:$0xff]
  %v1234 = vld [vmem:[%s11 + $0x28] sm:$0xff]
  %v1235 = vld [vmem:[%s11 + $0x30] sm:$0xff]
  %v1236 = vld [vmem:[%s11 + $0x38] sm:$0xff]
  %v1237 = vld [vmem:[%s11 + $0x40] sm:$0xff]
  %v1238 = vld [vmem:[%s11 + $0x48] sm:$0xff]
  %v1239 = vld [vmem:[%s11 + $0x50] sm:$0xff]
  %v1240 = vld [vmem:[%s11 + $0x58] sm:$0xff]
  %v1241 = vld [vmem:[%s11 + $0x60] sm:$0xff]
  %v1242 = vld [vmem:[%s11 + $0x68] sm:$0xff]
  %v1243 = vld [vmem:[%s11 + $0x70] sm:$0xff]
  %v1244 = vld [vmem:[%s11 + $0x78] sm:$0xff]
  %v1245 = vld [vmem:[%s11 + $0x80] sm:$0xff]
  %v1246 = vld [vmem:[%s11 + $0x88] sm:$0xff]
  %v1247 = vld [vmem:[%s11 + $0x90] sm:$0xff]
  %v1248 = vld [vmem:[%s11 + $0x98] sm:$0xff]
  %v1249 = vld [vmem:[%s11 + $0xa0] sm:$0xff]
  %v1250 = vld [vmem:[%s11 + $0xa8] sm:$0xff]
  %v1251 = vld [vmem:[%s11 + $0xb0] sm:$0xff]
  %v1252 = vld [vmem:[%s11 + $0xb8] sm:$0xff]
  %v1253 = vld [vmem:[%s11 + $0xc0] sm:$0xff]
  %v1254 = vld [vmem:[%s11 + $0xc8] sm:$0xff]
  %v1255 = vld [vmem:[%s11 + $0xd0] sm:$0xff]
  %v1256 = vld [vmem:[%s11 + $0xd8] sm:$0xff]
  %v1257 = vld [vmem:[%s11 + $0xe0] sm:$0xff]
  %v1258 = vld [vmem:[%s11 + $0xe8] sm:$0xff]
  %v1259 = vld [vmem:[%s11 + $0xf0] sm:$0xff]
  %v1260 = vld [vmem:[%s11 + $0xf8] sm:$0xff]
  %v1261 = vld [vmem:[%s11 + $0x100] sm:$0xff]
  %v1262 = vld [vmem:[%s11 + $0x108] sm:$0xff]
  %v1263 = vld [vmem:[%s11 + $0x110] sm:$0xff]
  %v1264 = vld [vmem:[%s11 + $0x118] sm:$0xff]
  %v1265 = vld [vmem:[%s11 + $0x120] sm:$0xff]
  %v1266 = vld [vmem:[%s11 + $0x128] sm:$0xff]
  %v1267 = vld [vmem:[%s11 + $0x130] sm:$0xff]
  %v1268 = vld [vmem:[%s11 + $0x138] sm:$0xff]
  %v1269 = vld [vmem:[%s11 + $0x140] sm:$0xff]
  %v1270 = vld [vmem:[%s11 + $0x148] sm:$0xff]
  %v1271 = vld [vmem:[%s11 + $0x150] sm:$0xff]
  %v1272 = vld [vmem:[%s11 + $0x158] sm:$0xff]
  %v1273 = vld [vmem:[%s11 + $0x160] sm:$0xff]
  %v1274 = vld [vmem:[%s11 + $0x168] sm:$0xff]
  %v1275 = vld [vmem:[%s11 + $0x170] sm:$0xff]
  %v1276 = vld [vmem:[%s11 + $0x178] sm:$0xff]
  %v1277 = vld [vmem:[%s12] sm:$0x3]
  %v1279 = vperm.slane %v1277, 0
  %v1280 = vperm.slane %v1277, 1
  %v1331 = vunpack.c.l.b16 %v1229
  %v1332 = vunpack.c.h.b16 %v1229
  %v1333 = vunpack.c.l.b16 %v1230
  %v1334 = vunpack.c.h.b16 %v1230
  %v1335 = vunpack.c.l.b16 %v1231
  %v1336 = vunpack.c.h.b16 %v1231
  %v1337 = vunpack.c.l.b16 %v1232
  %v1338 = vunpack.c.h.b16 %v1232
  %v1339 = vunpack.c.l.b16 %v1233
  %v1340 = vunpack.c.h.b16 %v1233
  %v1341 = vunpack.c.l.b16 %v1234
  %v1342 = vunpack.c.h.b16 %v1234
  %v1343 = vunpack.c.l.b16 %v1235
  %v1344 = vunpack.c.h.b16 %v1235
  %v1345 = vunpack.c.l.b16 %v1236
  %v1346 = vunpack.c.h.b16 %v1236
  %v1347 = vunpack.c.l.b16 %v1237
  %v1348 = vunpack.c.h.b16 %v1237
  %v1349 = vunpack.c.l.b16 %v1238
  %v1350 = vunpack.c.h.b16 %v1238
  %v1351 = vunpack.c.l.b16 %v1239
  %v1352 = vunpack.c.h.b16 %v1239
  %v1353 = vunpack.c.l.b16 %v1240
  %v1354 = vunpack.c.h.b16 %v1240
  %v1355 = vunpack.c.l.b16 %v1241
  %v1356 = vunpack.c.h.b16 %v1241
  %v1357 = vunpack.c.l.b16 %v1242
  %v1358 = vunpack.c.h.b16 %v1242
  %v1359 = vunpack.c.l.b16 %v1243
  %v1360 = vunpack.c.h.b16 %v1243
  %v1361 = vunpack.c.l.b16 %v1244
  %v1362 = vunpack.c.h.b16 %v1244
  %v1363 = vunpack.c.l.b16 %v1245
  %v1364 = vunpack.c.h.b16 %v1245
  %v1365 = vunpack.c.l.b16 %v1246
  %v1366 = vunpack.c.h.b16 %v1246
  %v1367 = vunpack.c.l.b16 %v1247
  %v1368 = vunpack.c.h.b16 %v1247
  %v1369 = vunpack.c.l.b16 %v1248
  %v1370 = vunpack.c.h.b16 %v1248
  %v1371 = vunpack.c.l.b16 %v1249
  %v1372 = vunpack.c.h.b16 %v1249
  %v1373 = vunpack.c.l.b16 %v1250
  %v1374 = vunpack.c.h.b16 %v1250
  %v1375 = vunpack.c.l.b16 %v1251
  %v1376 = vunpack.c.h.b16 %v1251
  %v1377 = vunpack.c.l.b16 %v1252
  %v1378 = vunpack.c.h.b16 %v1252
  %v1379 = vunpack.c.l.b16 %v1253
  %v1380 = vunpack.c.h.b16 %v1253
  %v1381 = vunpack.c.l.b16 %v1254
  %v1382 = vunpack.c.h.b16 %v1254
  %v1383 = vunpack.c.l.b16 %v1255
  %v1384 = vunpack.c.h.b16 %v1255
  %v1385 = vunpack.c.l.b16 %v1256
  %v1386 = vunpack.c.h.b16 %v1256
  %v1387 = vunpack.c.l.b16 %v1257
  %v1388 = vunpack.c.h.b16 %v1257
  %v1389 = vunpack.c.l.b16 %v1258
  %v1390 = vunpack.c.h.b16 %v1258
  %v1391 = vunpack.c.l.b16 %v1259
  %v1392 = vunpack.c.h.b16 %v1259
  %v1393 = vunpack.c.l.b16 %v1260
  %v1394 = vunpack.c.h.b16 %v1260
  %v1395 = vunpack.c.l.b16 %v1261
  %v1396 = vunpack.c.h.b16 %v1261
  %v1397 = vunpack.c.l.b16 %v1262
  %v1398 = vunpack.c.h.b16 %v1262
  %v1399 = vunpack.c.l.b16 %v1263
  %v1400 = vunpack.c.h.b16 %v1263
  %v1401 = vunpack.c.l.b16 %v1264
  %v1402 = vunpack.c.h.b16 %v1264
  %v1403 = vunpack.c.l.b16 %v1265
  %v1404 = vunpack.c.h.b16 %v1265
  %v1405 = vunpack.c.l.b16 %v1266
  %v1406 = vunpack.c.h.b16 %v1266
  %v1407 = vunpack.c.l.b16 %v1267
  %v1408 = vunpack.c.h.b16 %v1267
  %v1409 = vunpack.c.l.b16 %v1268
  %v1410 = vunpack.c.h.b16 %v1268
  %v1411 = vunpack.c.l.b16 %v1269
  %v1412 = vunpack.c.h.b16 %v1269
  %v1413 = vunpack.c.l.b16 %v1270
  %v1414 = vunpack.c.h.b16 %v1270
  %v1415 = vunpack.c.l.b16 %v1271
  %v1416 = vunpack.c.h.b16 %v1271
  %v1417 = vunpack.c.l.b16 %v1272
  %v1418 = vunpack.c.h.b16 %v1272
  %v1419 = vunpack.c.l.b16 %v1273
  %v1420 = vunpack.c.h.b16 %v1273
  %v1421 = vunpack.c.l.b16 %v1274
  %v1422 = vunpack.c.h.b16 %v1274
  %v1423 = vunpack.c.l.b16 %v1275
  %v1424 = vunpack.c.h.b16 %v1275
  %v1425 = vunpack.c.l.b16 %v1276
  %v1426 = vunpack.c.h.b16 %v1276
  %v1427 = vpack.c.b16 %v1333, %v1331
  %v1428 = vpack.c.b16 %v1334, %v1332
  %v1429 = vpack.c.b16 %v1337, %v1335
  %v1430 = vpack.c.b16 %v1338, %v1336
  %v1431 = vpack.c.b16 %v1341, %v1339
  %v1432 = vpack.c.b16 %v1342, %v1340
  %v1433 = vpack.c.b16 %v1345, %v1343
  %v1434 = vpack.c.b16 %v1346, %v1344
  %v1435 = vpack.c.b16 %v1349, %v1347
  %v1436 = vpack.c.b16 %v1350, %v1348
  %v1437 = vpack.c.b16 %v1353, %v1351
  %v1438 = vpack.c.b16 %v1354, %v1352
  %v1439 = vpack.c.b16 %v1357, %v1355
  %v1440 = vpack.c.b16 %v1358, %v1356
  %v1441 = vpack.c.b16 %v1361, %v1359
  %v1442 = vpack.c.b16 %v1362, %v1360
  %v1443 = vpack.c.b16 %v1365, %v1363
  %v1444 = vpack.c.b16 %v1366, %v1364
  %v1445 = vpack.c.b16 %v1369, %v1367
  %v1446 = vpack.c.b16 %v1370, %v1368
  %v1447 = vpack.c.b16 %v1373, %v1371
  %v1448 = vpack.c.b16 %v1374, %v1372
  %v1449 = vpack.c.b16 %v1377, %v1375
  %v1450 = vpack.c.b16 %v1378, %v1376
  %v1451 = vpack.c.b16 %v1381, %v1379
  %v1452 = vpack.c.b16 %v1382, %v1380
  %v1453 = vpack.c.b16 %v1385, %v1383
  %v1454 = vpack.c.b16 %v1386, %v1384
  %v1455 = vpack.c.b16 %v1389, %v1387
  %v1456 = vpack.c.b16 %v1390, %v1388
  %v1457 = vpack.c.b16 %v1393, %v1391
  %v1458 = vpack.c.b16 %v1394, %v1392
  %v1459 = vpack.c.b16 %v1397, %v1395
  %v1460 = vpack.c.b16 %v1398, %v1396
  %v1461 = vpack.c.b16 %v1401, %v1399
  %v1462 = vpack.c.b16 %v1402, %v1400
  %v1463 = vpack.c.b16 %v1405, %v1403
  %v1464 = vpack.c.b16 %v1406, %v1404
  %v1465 = vpack.c.b16 %v1409, %v1407
  %v1466 = vpack.c.b16 %v1410, %v1408
  %v1467 = vpack.c.b16 %v1413, %v1411
  %v1468 = vpack.c.b16 %v1414, %v1412
  %v1469 = vpack.c.b16 %v1417, %v1415
  %v1470 = vpack.c.b16 %v1418, %v1416
  %v1471 = vpack.c.b16 %v1421, %v1419
  %v1472 = vpack.c.b16 %v1422, %v1420
  %v1473 = vpack.c.b16 %v1425, %v1423
  %v1474 = vpack.c.b16 %v1426, %v1424
  %1523 = vmatpush.bf16.msra.mxu0 %v1441
  %1524 = vmatpush.bf16.msra.mxu0 %v1439
  %1525 = vmatpush.bf16.msra.mxu0 %v1437
  %1526 = vmatpush.bf16.msra.mxu0 %v1435
  %1527 = vmatpush.bf16.msra.mxu0 %v1433
  %1528 = vmatpush.bf16.msra.mxu0 %v1431
  %1529 = vmatpush.bf16.msra.mxu0 %v1429
  %1530 = vmatpush.bf16.msra.mxu0 %v1427
  %1531 = vmatmul.bf16.gmra.mxu0 %v1226
  %v1532 = vpop.f32.mrf.mxu0
  %v1533 = vadd.f32 %v1279, %v1532
  %v1534 = vpop.f32.mrf.mxu0
  %v1535 = vadd.f32 %v1279, %v1534
  %1536 = vdwg.mxu0
  %1537 = vmatpush.bf16.msra.mxu0 %v1457
  %1538 = vmatpush.bf16.msra.mxu0 %v1455
  %1539 = vmatpush.bf16.msra.mxu0 %v1453
  %1540 = vmatpush.bf16.msra.mxu0 %v1451
  %1541 = vmatpush.bf16.msra.mxu0 %v1449
  %1542 = vmatpush.bf16.msra.mxu0 %v1447
  %1543 = vmatpush.bf16.msra.mxu0 %v1445
  %1544 = vmatpush.bf16.msra.mxu0 %v1443
  %1545 = vmatmul.bf16.gmra.mxu0 %v1227
  %v1546 = vpop.f32.mrf.mxu0
  %v1547 = vadd.f32 %v1533, %v1546
  %v1548 = vpop.f32.mrf.mxu0
  %v1549 = vadd.f32 %v1535, %v1548
  %1550 = vdwg.mxu0
  %1551 = vmatpush.bf16.msra.mxu0 %v1473
  %1552 = vmatpush.bf16.msra.mxu0 %v1471
  %1553 = vmatpush.bf16.msra.mxu0 %v1469
  %1554 = vmatpush.bf16.msra.mxu0 %v1467
  %1555 = vmatpush.bf16.msra.mxu0 %v1465
  %1556 = vmatpush.bf16.msra.mxu0 %v1463
  %1557 = vmatpush.bf16.msra.mxu0 %v1461
  %1558 = vmatpush.bf16.msra.mxu0 %v1459
  %1559 = vmatmul.bf16.gmra.mxu0 %v1228
  %v1560 = vpop.f32.mrf.mxu0
  %v1561 = vadd.f32 %v1547, %v1560
  %v1562 = vpop.f32.mrf.mxu0
  %v1563 = vadd.f32 %v1549, %v1562
  %1564 = vdwg.mxu0
  %1565 = vmatpush.bf16.msra.mxu0 %v1442
  %1566 = vmatpush.bf16.msra.mxu0 %v1440
  %1567 = vmatpush.bf16.msra.mxu0 %v1438
  %1568 = vmatpush.bf16.msra.mxu0 %v1436
  %1569 = vmatpush.bf16.msra.mxu0 %v1434
  %1570 = vmatpush.bf16.msra.mxu0 %v1432
  %1571 = vmatpush.bf16.msra.mxu0 %v1430
  %1572 = vmatpush.bf16.msra.mxu0 %v1428
  %1573 = vmatmul.bf16.gmra.mxu0 %v1226
  %v1574 = vpop.f32.mrf.mxu0
  %v1575 = vadd.f32 %v1280, %v1574
  %v1576 = vpop.f32.mrf.mxu0
  %v1577 = vadd.f32 %v1280, %v1576
  %1578 = vdwg.mxu0
  %1579 = vmatpush.bf16.msra.mxu0 %v1458
  %1580 = vmatpush.bf16.msra.mxu0 %v1456
  %1581 = vmatpush.bf16.msra.mxu0 %v1454
  %1582 = vmatpush.bf16.msra.mxu0 %v1452
  %1583 = vmatpush.bf16.msra.mxu0 %v1450
  %1584 = vmatpush.bf16.msra.mxu0 %v1448
  %1585 = vmatpush.bf16.msra.mxu0 %v1446
  %1586 = vmatpush.bf16.msra.mxu0 %v1444
  %1587 = vmatmul.bf16.gmra.mxu0 %v1227
  %v1588 = vpop.f32.mrf.mxu0
  %v1589 = vadd.f32 %v1575, %v1588
  %v1590 = vpop.f32.mrf.mxu0
  %v1591 = vadd.f32 %v1577, %v1590
  %1592 = vdwg.mxu0
  %1593 = vmatpush.bf16.msra.mxu0 %v1474
  %1594 = vmatpush.bf16.msra.mxu0 %v1472
  %1595 = vmatpush.bf16.msra.mxu0 %v1470
  %1596 = vmatpush.bf16.msra.mxu0 %v1468
  %1597 = vmatpush.bf16.msra.mxu0 %v1466
  %1598 = vmatpush.bf16.msra.mxu0 %v1464
  %1599 = vmatpush.bf16.msra.mxu0 %v1462
  %1600 = vmatpush.bf16.msra.mxu0 %v1460
  %1601 = vmatmul.bf16.gmra.mxu0 %v1228
  %v1602 = vpop.f32.mrf.mxu0
  %v1603 = vadd.f32 %v1589, %v1602
  %v1604 = vpop.f32.mrf.mxu0
  %v1605 = vadd.f32 %v1591, %v1604
  %1606 = vdwg.mxu0
  %v1607 = vmax.f32 %v1561, 0.0
  %v1608 = vmax.f32 %v1603, 0.0
  %v1609 = vmax.f32 %v1563, 0.0
  %v1610 = vmax.f32 %v1605, 0.0
  %v1611 = vpack.c.bf16 %v1609, %v1607
  %v1612 = vpack.c.bf16 %v1610, %v1608
  %v1613 = vld [vmem:[%s13] sm:$0xf]
  %v1614 = vld [vmem:[%s13 + $0x4] sm:$0xf]
  %v1615 = vld [vmem:[%s13 + $0x8] sm:$0xf]
  %v1616 = vld [vmem:[%s13 + $0xc] sm:$0xf]
  %v1617 = vld [vmem:[%s13 + $0x10] sm:$0xf]
  %v1618 = vld [vmem:[%s13 + $0x14] sm:$0xf]
  %v1619 = vld [vmem:[%s13 + $0x18] sm:$0xf]
  %v1620 = vld [vmem:[%s13 + $0x1c] sm:$0xf]
  %v1621 = vld [vmem:[%s13 + $0x20] sm:$0xf]
  %v1622 = vld [vmem:[%s13 + $0x24] sm:$0xf]
  %v1623 = vld [vmem:[%s13 + $0x28] sm:$0xf]
  %v1624 = vld [vmem:[%s13 + $0x2c] sm:$0xf]
  %v1625 = vld [vmem:[%s13 + $0x30] sm:$0xf]
  %v1626 = vld [vmem:[%s13 + $0x34] sm:$0xf]
  %v1627 = vld [vmem:[%s13 + $0x38] sm:$0xf]
  %v1628 = vld [vmem:[%s13 + $0x3c] sm:$0xf]
  %v1629 = vld [vmem:[%s13 + $0x40] sm:$0xf]
  %v1630 = vld [vmem:[%s13 + $0x44] sm:$0xf]
  %v1631 = vld [vmem:[%s13 + $0x48] sm:$0xf]
  %v1632 = vld [vmem:[%s13 + $0x4c] sm:$0xf]
  %v1633 = vld [vmem:[%s13 + $0x50] sm:$0xf]
  %v1634 = vld [vmem:[%s13 + $0x54] sm:$0xf]
  %v1635 = vld [vmem:[%s13 + $0x58] sm:$0xf]
  %v1636 = vld [vmem:[%s13 + $0x5c] sm:$0xf]
  %v1637 = vld [vmem:[%s13 + $0x60] sm:$0xf]
  %v1638 = vld [vmem:[%s13 + $0x64] sm:$0xf]
  %v1639 = vld [vmem:[%s13 + $0x68] sm:$0xf]
  %v1640 = vld [vmem:[%s13 + $0x6c] sm:$0xf]
  %v1641 = vld [vmem:[%s13 + $0x70] sm:$0xf]
  %v1642 = vld [vmem:[%s13 + $0x74] sm:$0xf]
  %v1643 = vld [vmem:[%s13 + $0x78] sm:$0xf]
  %v1644 = vld [vmem:[%s13 + $0x7c] sm:$0xf]
  %v1645 = vld [vmem:[%s14] sm:$0x1]
  %v1647 = vperm.slane %v1645, 0
  %v1681 = vunpack.c.l.b16 %v1613
  %v1682 = vunpack.c.l.b16 %v1614
  %v1683 = vunpack.c.l.b16 %v1615
  %v1684 = vunpack.c.l.b16 %v1616
  %v1685 = vunpack.c.l.b16 %v1617
  %v1686 = vunpack.c.l.b16 %v1618
  %v1687 = vunpack.c.l.b16 %v1619
  %v1688 = vunpack.c.l.b16 %v1620
  %v1689 = vunpack.c.l.b16 %v1621
  %v1690 = vunpack.c.l.b16 %v1622
  %v1691 = vunpack.c.l.b16 %v1623
  %v1692 = vunpack.c.l.b16 %v1624
  %v1693 = vunpack.c.l.b16 %v1625
  %v1694 = vunpack.c.l.b16 %v1626
  %v1695 = vunpack.c.l.b16 %v1627
  %v1696 = vunpack.c.l.b16 %v1628
  %v1697 = vunpack.c.l.b16 %v1629
  %v1698 = vunpack.c.l.b16 %v1630
  %v1699 = vunpack.c.l.b16 %v1631
  %v1700 = vunpack.c.l.b16 %v1632
  %v1701 = vunpack.c.l.b16 %v1633
  %v1702 = vunpack.c.l.b16 %v1634
  %v1703 = vunpack.c.l.b16 %v1635
  %v1704 = vunpack.c.l.b16 %v1636
  %v1705 = vunpack.c.l.b16 %v1637
  %v1706 = vunpack.c.l.b16 %v1638
  %v1707 = vunpack.c.l.b16 %v1639
  %v1708 = vunpack.c.l.b16 %v1640
  %v1709 = vunpack.c.l.b16 %v1641
  %v1710 = vunpack.c.l.b16 %v1642
  %v1711 = vunpack.c.l.b16 %v1643
  %v1712 = vunpack.c.l.b16 %v1644
  %v1713 = vpack.c.b16 %v1682, %v1681
  %v1714 = vpack.c.b16 %v1684, %v1683
  %v1715 = vpack.c.b16 %v1686, %v1685
  %v1716 = vpack.c.b16 %v1688, %v1687
  %v1717 = vpack.c.b16 %v1690, %v1689
  %v1718 = vpack.c.b16 %v1692, %v1691
  %v1719 = vpack.c.b16 %v1694, %v1693
  %v1720 = vpack.c.b16 %v1696, %v1695
  %v1721 = vpack.c.b16 %v1698, %v1697
  %v1722 = vpack.c.b16 %v1700, %v1699
  %v1723 = vpack.c.b16 %v1702, %v1701
  %v1724 = vpack.c.b16 %v1704, %v1703
  %v1725 = vpack.c.b16 %v1706, %v1705
  %v1726 = vpack.c.b16 %v1708, %v1707
  %v1727 = vpack.c.b16 %v1710, %v1709
  %v1728 = vpack.c.b16 %v1712, %v1711
  %1745 = vmatpush.bf16.msra.mxu0 %v1720
  %1746 = vmatpush.bf16.msra.mxu0 %v1719
  %1747 = vmatpush.bf16.msra.mxu0 %v1718
  %1748 = vmatpush.bf16.msra.mxu0 %v1717
  %1749 = vmatpush.bf16.msra.mxu0 %v1716
  %1750 = vmatpush.bf16.msra.mxu0 %v1715
  %1751 = vmatpush.bf16.msra.mxu0 %v1714
  %1752 = vmatpush.bf16.msra.mxu0 %v1713
  %1753 = vmatmul.bf16.gmra.mxu0 %v1611
  %v1754 = vpop.f32.mrf.mxu0
  %v1755 = vadd.f32 %v1647, %v1754
  %v1756 = vpop.f32.mrf.mxu0
  %v1757 = vadd.f32 %v1647, %v1756
  %1758 = vdwg.mxu0
  %1759 = vmatpush.bf16.msra.mxu0 %v1728
  %1760 = vmatpush.bf16.msra.mxu0 %v1727
  %1761 = vmatpush.bf16.msra.mxu0 %v1726
  %1762 = vmatpush.bf16.msra.mxu0 %v1725
  %1763 = vmatpush.bf16.msra.mxu0 %v1724
  %1764 = vmatpush.bf16.msra.mxu0 %v1723
  %1765 = vmatpush.bf16.msra.mxu0 %v1722
  %1766 = vmatpush.bf16.msra.mxu0 %v1721
  %1767 = vmatmul.bf16.gmra.mxu0 %v1612
  %v1768 = vpop.f32.mrf.mxu0
  %v1769 = vadd.f32 %v1755, %v1768
  %v1770 = vpop.f32.mrf.mxu0
  %v1771 = vadd.f32 %v1757, %v1770
  %1772 = vdwg.mxu0
  %v1773 = vmax.f32 %v1769, 0.0
  %v1774 = vmax.f32 %v1771, 0.0
  %v1775 = vpack.c.bf16 %v1774, %v1773
  %v1776 = vld [vmem:[%s15] sm:$0xf]
  %v1777 = vld [vmem:[%s15 + $0x4] sm:$0xf]
  %v1778 = vld [vmem:[%s15 + $0x8] sm:$0xf]
  %v1779 = vld [vmem:[%s15 + $0xc] sm:$0xf]
  %v1780 = vld [vmem:[%s15 + $0x10] sm:$0xf]
  %v1781 = vld [vmem:[%s15 + $0x14] sm:$0xf]
  %v1782 = vld [vmem:[%s15 + $0x18] sm:$0xf]
  %v1783 = vld [vmem:[%s15 + $0x1c] sm:$0xf]
  %v1784 = vld [vmem:[%s15 + $0x20] sm:$0xf]
  %v1785 = vld [vmem:[%s15 + $0x24] sm:$0xf]
  %v1786 = vld [vmem:[%s15 + $0x28] sm:$0xf]
  %v1787 = vld [vmem:[%s15 + $0x2c] sm:$0xf]
  %v1788 = vld [vmem:[%s15 + $0x30] sm:$0xf]
  %v1789 = vld [vmem:[%s15 + $0x34] sm:$0xf]
  %v1790 = vld [vmem:[%s15 + $0x38] sm:$0xf]
  %v1791 = vld [vmem:[%s15 + $0x3c] sm:$0xf]
  %v1792 = vld [vmem:[%s16] sm:$0x1]
  %v1794 = vperm.slane %v1792, 0
  %v1812 = vunpack.c.l.b16 %v1776
  %v1813 = vunpack.c.l.b16 %v1777
  %v1814 = vunpack.c.l.b16 %v1778
  %v1815 = vunpack.c.l.b16 %v1779
  %v1816 = vunpack.c.l.b16 %v1780
  %v1817 = vunpack.c.l.b16 %v1781
  %v1818 = vunpack.c.l.b16 %v1782
  %v1819 = vunpack.c.l.b16 %v1783
  %v1820 = vunpack.c.l.b16 %v1784
  %v1821 = vunpack.c.l.b16 %v1785
  %v1822 = vunpack.c.l.b16 %v1786
  %v1823 = vunpack.c.l.b16 %v1787
  %v1824 = vunpack.c.l.b16 %v1788
  %v1825 = vunpack.c.l.b16 %v1789
  %v1826 = vunpack.c.l.b16 %v1790
  %v1827 = vunpack.c.l.b16 %v1791
  %v1828 = vpack.c.b16 %v1813, %v1812
  %v1829 = vpack.c.b16 %v1815, %v1814
  %v1830 = vpack.c.b16 %v1817, %v1816
  %v1831 = vpack.c.b16 %v1819, %v1818
  %v1832 = vpack.c.b16 %v1821, %v1820
  %v1833 = vpack.c.b16 %v1823, %v1822
  %v1834 = vpack.c.b16 %v1825, %v1824
  %v1835 = vpack.c.b16 %v1827, %v1826
  %1844 = vmatpush.bf16.msra.mxu0 %v1835
  %1845 = vmatpush.bf16.msra.mxu0 %v1834
  %1846 = vmatpush.bf16.msra.mxu0 %v1833
  %1847 = vmatpush.bf16.msra.mxu0 %v1832
  %1848 = vmatpush.bf16.msra.mxu0 %v1831
  %1849 = vmatpush.bf16.msra.mxu0 %v1830
  %1850 = vmatpush.bf16.msra.mxu0 %v1829
  %1851 = vmatpush.bf16.msra.mxu0 %v1828
  %1852 = vmatmul.bf16.gmra.mxu0 %v1775
  %v1853 = vpop.f32.mrf.mxu0
  %v1854 = vadd.f32 %v1794, %v1853
  %v1855 = vpop.f32.mrf.mxu0
  %v1856 = vadd.f32 %v1794, %v1855
  %1857 = vdwg.mxu0
  %v1858 = vadd.f32 %v888, %v1854
  %v1859 = vadd.f32 %v890, %v1856
  %v1860 = vpack.c.bf16 %v1858, %v1858
  %v1861 = vpack.c.bf16 %v1859, %v1859
  %1862 = vst [vmem:[%s17] sm:$0xf] %v1860
  %1863 = vst [vmem:[%s17 + $0x4] sm:$0xf] %v1861
  // Predicated region
  $region70: #{_dla_forward_impl.1} parent=0 // pred_check
    _
  $region71: #{_dla_forward_impl.1} parent=0 // pred_check_branch
    %1865 = sbr.rel (0) target = $region73
  $region72: #{_dla_forward_impl.1} parent=0 // pred_region
    _
  $region73: #{_dla_forward_impl.1} parent=0 // pred_fallthru
    _
  // Predicated region
  $region74: #{_dla_forward_impl.1} parent=0 // pred_check
    _
  $region75: #{_dla_forward_impl.1} parent=0 // pred_check_branch
    %1867 = sbr.rel (0) target = $region77
  $region76: #{_dla_forward_impl.1} parent=0 // pred_region
    _
  $region77: #{_dla_forward_impl.1} parent=0 // pred_fallthru
    _

</llo_original>
